<compile_context>
chip_gen: v6e
topology: v6e:2x2x1
jax: 0.10.0
libtpu: 0.0.40
codegen_flags: <defaults>
</compile_context>

<pallas_src>
import jax
import jax.numpy as jnp
import numpy as np
from jax.experimental import pallas as pl
from jax.experimental.pallas import tpu as pltpu

HIDDEN = (512, 128, 64, 32)  # fixed architecture of the PyTorch MLP


def _round_up(n, m):
    return ((n + m - 1) // m) * m


def _has_two_tensorcores():
    """True for chips with 2 TensorCores (v7x, and megacore v4/v5p)."""
    try:
        kind = jax.devices()[0].device_kind.lower()
    except Exception:
        return False
    return ("v7" in kind) or ("v4" in kind) or ("v5p" in kind)


def make_kernel(dims_p):
    """dims_p = (Dp, 512, 128, 128, 128, Cp) — padded layer widths."""
    outs = list(dims_p[1:])
    b_off = [0]
    for o in outs:
        b_off.append(b_off[-1] + o)          # bias lane offsets (all 128-aligned)
    w_off = [0]
    for o in outs[2:]:
        w_off.append(w_off[-1] + o)          # offsets inside packed W2|W3|W4

    def kernel(x_ref, w0_ref, w1_ref, w234_ref, b_ref, o_ref):
        # In-kernel f32 -> bf16 cast of the activations (saves a wrapper-side
        # HBM round-trip; VPU cost is hidden under the MXU work).
        h = x_ref[...].astype(jnp.bfloat16)

        # Layer 0: (tile, Dp) @ (Dp, 512)
        acc = jnp.dot(h, w0_ref[...], preferred_element_type=jnp.float32)
        hf = jnp.maximum(acc + b_ref[0:1, b_off[0]:b_off[1]], 0.0)
        h = hf.astype(jnp.bfloat16)

        # Layer 1: (tile, 512) @ (512, 128)
        acc = jnp.dot(h, w1_ref[...], preferred_element_type=jnp.float32)
        hf = jnp.maximum(acc + b_ref[0:1, b_off[1]:b_off[2]], 0.0)
        h = hf.astype(jnp.bfloat16)

        # Layers 2..4 from the packed (128, 256+Cp) weight slab.
        for li in range(3):
            w = w234_ref[:, w_off[li]:w_off[li + 1]]        # static 128-aligned slice
            acc = jnp.dot(h, w, preferred_element_type=jnp.float32)
            hf = jnp.maximum(acc + b_ref[0:1, b_off[2 + li]:b_off[3 + li]], 0.0)
            h = hf.astype(jnp.bfloat16)

        # NOTE: the PyTorch reference applies ReLU to the classifier output too,
        # so hf (post-ReLU logits) is what we store.
        o_ref[...] = hf.astype(o_ref.dtype)

    return kernel


def prepare_params(raw_params):
    """raw_params: list of 5 (w:(in,out) f32, b:(out,) f32) PyTorch-style values.

    Returns a dict of lane-padded, consolidated operands:
      w0   : bf16 (Dp, 512)
      w1   : bf16 (512, 128)
      w234 : bf16 (128, 256 + Cp)   (padded W2 | W3 | W4 concatenated on lanes)
      b    : f32  (1, 512+128+128+128+Cp)  (all biases concatenated on lanes)
    Zero padding keeps the math exact (padded cols give ReLU(0+0)=0).
    """
    (w0, b0), (w1, b1), (w2, b2), (w3, b3), (w4, b4) = raw_params
    D, C = w0.shape[0], w4.shape[1]
    Dp, Cp = _round_up(D, 128), _round_up(C, 128)
    outs_p = [512, 128, 128, 128, Cp]

    def pad_w(w, inp, outp):
        buf = jnp.zeros((inp, outp), jnp.float32).at[:w.shape[0], :w.shape[1]].set(w)
        return buf.astype(jnp.bfloat16)

    w0p = pad_w(w0, Dp, 512)
    w1p = pad_w(w1, 512, 128)
    w234p = jnp.concatenate(
        [pad_w(w2, 128, 128), pad_w(w3, 128, 128), pad_w(w4, 128, Cp)], axis=1)

    b_all = jnp.zeros((1, sum(outs_p)), jnp.float32)
    off = 0
    for b, outp in zip((b0, b1, b2, b3, b4), outs_p):
        b_all = b_all.at[0, off:off + b.shape[0]].set(b)
        off += outp

    return dict(w0=w0p, w1=w1p, w234=w234p, b=b_all,
                dims_p=(Dp, *outs_p), D=D, C=C)


def mlp_forward(x, params, *, tile_n=1024, min_grid_steps=None):
    """x: (N, D) f32. params: output of prepare_params. Returns (N, C) f32."""
    N, D = x.shape
    dims_p = params["dims_p"]
    Dp, Cp = dims_p[0], dims_p[-1]
    n_classes = params["C"]
    assert D == params["D"]

    if min_grid_steps is None:
        # Keep >= 2 grid steps on 2-TC chips so "parallel" actually shards the
        # batch across both TensorCores; on 1-TC chips a single step is best
        # (grid is a serial loop; extra steps only add ~0.35 us each).
        min_grid_steps = 2 if _has_two_tensorcores() else 1

    granule = 8  # f32 sublane granule for the (tile, Dp) / (tile, Cp) blocks
    tile = max(granule, min(tile_n, _round_up(N, granule)))
    if min_grid_steps > 1:
        tile = min(tile, max(granule, _round_up(-(-N // min_grid_steps), granule)))

    # VMEM budget clamp (double-buffered f32 in/out tiles + f32/bf16 intermediates
    # + ~0.5 MiB resident weights) — keeps the same code path safe on v7x (64 MiB).
    bytes_per_row = 2 * Dp * 4 + 2 * Cp * 4 + (512 + 128) * 6
    max_tile = max(granule, ((40 * 2**20) // bytes_per_row) // granule * granule)
    tile = min(tile, max_tile)

    Np = _round_up(N, tile)

    # Pad only when necessary; x stays f32 (the kernel casts to bf16 in VMEM).
    if (Np, Dp) == (N, D):
        x_in = x
    else:
        x_in = jnp.zeros((Np, Dp), x.dtype).at[:N, :D].set(x)

    vmem_whole = pl.BlockSpec(memory_space=pltpu.MemorySpace.VMEM)  # grid-invariant

    out_p = pl.pallas_call(
        make_kernel(dims_p),
        out_shape=jax.ShapeDtypeStruct((Np, Cp), jnp.float32),
        grid_spec=pltpu.PrefetchScalarGridSpec(
            num_scalar_prefetch=0,
            grid=(Np // tile,),
            in_specs=[pl.BlockSpec((tile, Dp), lambda i: (i, 0)),  # batch-tiled x
                      vmem_whole, vmem_whole, vmem_whole, vmem_whole],
            out_specs=pl.BlockSpec((tile, Cp), lambda i: (i, 0)),
        ),
        compiler_params=pltpu.CompilerParams(
            dimension_semantics=("parallel",),       # batch tiles are independent
            vmem_limit_bytes=48 * 1024 * 1024,       # headroom, still v7x-safe
        ),
    )(x_in, params["w0"], params["w1"], params["w234"], params["b"])

    return out_p[:N, :n_classes]


def mlp_reference(x, raw_params, *, bf16_matmul=False):
    """Pure-JAX reference. bf16_matmul=True mirrors the kernel's MXU precision."""
    h = x
    for w, b in raw_params:
        if bf16_matmul:
            acc = jnp.dot(h.astype(jnp.bfloat16), w.astype(jnp.bfloat16),
                          preferred_element_type=jnp.float32)
        else:
            acc = jnp.dot(h, w)
        h = jnp.maximum(acc + b[None, :], 0.0)
    return h


if __name__ == "__main__":
    input_size = 256   # D (multiple of 128 -> no wrapper-side padding of x)
    n_classes = 10     # C
    N = 256            # small demo batch

    key = jax.random.PRNGKey(0)
    keys = jax.random.split(key, 11)

    # PyTorch nn.Linear-style init (uniform +/- 1/sqrt(fan_in)), W stored as (in, out).
    dims = [input_size, *HIDDEN, n_classes]
    raw_params = []
    for li in range(5):
        fan_in, fan_out = dims[li], dims[li + 1]
        bound = 1.0 / float(np.sqrt(fan_in))
        w = jax.random.uniform(keys[2 * li], (fan_in, fan_out), jnp.float32, -bound, bound)
        b = jax.random.uniform(keys[2 * li + 1], (fan_out,), jnp.float32, -bound, bound)
        raw_params.append((w, b))
    x = jax.random.normal(keys[10], (N, input_size), jnp.float32)

    params = prepare_params(raw_params)
    out = jax.block_until_ready(mlp_forward(x, params))
    assert out.shape == (N, n_classes)

    # Check against a reference with matching (bf16-in, f32-acc) matmul precision...
    ref_bf16 = jax.block_until_ready(mlp_reference(x, raw_params, bf16_matmul=True))
    np.testing.assert_allclose(np.asarray(out), np.asarray(ref_bf16), rtol=2e-2, atol=2e-2)

    # ...and a coarser sanity check against the full-f32 forward.
    ref_f32 = jax.block_until_ready(mlp_reference(x, raw_params, bf16_matmul=False))
    np.testing.assert_allclose(np.asarray(out), np.asarray(ref_f32), rtol=5e-2, atol=5e-2)

    print("KERNEL_OK")
</pallas_src>

<mosaic_0001>
module attributes {stable_mosaic.version = 11 : i64} {
  func.func @kernel(%arg0: i32, %arg1: memref<256x256xf32, #tpu.memory_space<vmem>>, %arg2: memref<256x512xbf16, #tpu.memory_space<vmem>>, %arg3: memref<512x128xbf16, #tpu.memory_space<vmem>>, %arg4: memref<128x384xbf16, #tpu.memory_space<vmem>>, %arg5: memref<1x1024xf32, #tpu.memory_space<vmem>>, %arg6: memref<256x128xf32, #tpu.memory_space<vmem>>) attributes {dimension_semantics = [#tpu.dimension_semantics<parallel>], iteration_bounds = array<i64: 1>, scalar_prefetch = 0 : i64, scratch_operands = 0 : i64, tpu.core_type = #tpu.core_type<tc>, window_params = [{transform_indices = @transform_0, window_bounds = array<i64: 256, 256>}, {pipeline_mode = #tpu.pipeline_mode<synchronous>, transform_indices = @transform_1, window_bounds = array<i64: 256, 512>}, {pipeline_mode = #tpu.pipeline_mode<synchronous>, transform_indices = @transform_2, window_bounds = array<i64: 512, 128>}, {pipeline_mode = #tpu.pipeline_mode<synchronous>, transform_indices = @transform_3, window_bounds = array<i64: 128, 384>}, {pipeline_mode = #tpu.pipeline_mode<synchronous>, transform_indices = @transform_4, window_bounds = array<i64: 1, 1024>}, {transform_indices = @transform_5, window_bounds = array<i64: 256, 128>}]} {
    %c0 = arith.constant 0 : index
    %c0_0 = arith.constant 0 : index
    %0 = vector.load %arg1[%c0, %c0_0] : memref<256x256xf32, #tpu.memory_space<vmem>>, vector<256x256xf32>
    %1 = arith.truncf %0 : vector<256x256xf32> to vector<256x256xbf16>
    %c0_1 = arith.constant 0 : index
    %c0_2 = arith.constant 0 : index
    %2 = vector.load %arg2[%c0_1, %c0_2] : memref<256x512xbf16, #tpu.memory_space<vmem>>, vector<256x512xbf16>
    %cst = arith.constant dense<0.000000e+00> : vector<256x512xf32>
    %3 = tpu.matmul %1, %2, %cst {dimension_numbers = #tpu.dot_dimension_numbers<[1], [0], [0], [1], [0, 0, 1, 1], [], []>} : vector<256x256xbf16>, vector<256x512xbf16>, vector<256x512xf32> -> vector<256x512xf32>
    %c0_3 = arith.constant 0 : index
    %c0_4 = arith.constant 0 : index
    %4 = vector.load %arg5[%c0_3, %c0_4] : memref<1x1024xf32, #tpu.memory_space<vmem>>, vector<1x512xf32>
    %5 = vector.broadcast %4 : vector<1x512xf32> to vector<256x512xf32>
    %6 = arith.addf %3, %5 : vector<256x512xf32>
    %cst_5 = arith.constant 0.000000e+00 : f32
    %7 = vector.broadcast %cst_5 : f32 to vector<256x512xf32>
    %8 = arith.maximumf %6, %7 : vector<256x512xf32>
    %9 = arith.truncf %8 : vector<256x512xf32> to vector<256x512xbf16>
    %c0_6 = arith.constant 0 : index
    %c0_7 = arith.constant 0 : index
    %10 = vector.load %arg3[%c0_6, %c0_7] : memref<512x128xbf16, #tpu.memory_space<vmem>>, vector<512x128xbf16>
    %cst_8 = arith.constant dense<0.000000e+00> : vector<256x128xf32>
    %11 = tpu.matmul %9, %10, %cst_8 {dimension_numbers = #tpu.dot_dimension_numbers<[1], [0], [0], [1], [0, 0, 1, 1], [], []>} : vector<256x512xbf16>, vector<512x128xbf16>, vector<256x128xf32> -> vector<256x128xf32>
    %c0_9 = arith.constant 0 : index
    %c512 = arith.constant 512 : index
    %12 = vector.load %arg5[%c0_9, %c512] : memref<1x1024xf32, #tpu.memory_space<vmem>>, vector<1x128xf32>
    %13 = vector.broadcast %12 : vector<1x128xf32> to vector<256x128xf32>
    %14 = arith.addf %11, %13 : vector<256x128xf32>
    %cst_10 = arith.constant 0.000000e+00 : f32
    %15 = vector.broadcast %cst_10 : f32 to vector<256x128xf32>
    %16 = arith.maximumf %14, %15 : vector<256x128xf32>
    %17 = arith.truncf %16 : vector<256x128xf32> to vector<256x128xbf16>
    %c0_11 = arith.constant 0 : index
    %c0_12 = arith.constant 0 : index
    %18 = vector.load %arg4[%c0_11, %c0_12] : memref<128x384xbf16, #tpu.memory_space<vmem>>, vector<128x128xbf16>
    %cst_13 = arith.constant dense<0.000000e+00> : vector<256x128xf32>
    %19 = tpu.matmul %17, %18, %cst_13 {dimension_numbers = #tpu.dot_dimension_numbers<[1], [0], [0], [1], [0, 0, 1, 1], [], []>} : vector<256x128xbf16>, vector<128x128xbf16>, vector<256x128xf32> -> vector<256x128xf32>
    %c0_14 = arith.constant 0 : index
    %c640 = arith.constant 640 : index
    %20 = vector.load %arg5[%c0_14, %c640] : memref<1x1024xf32, #tpu.memory_space<vmem>>, vector<1x128xf32>
    %21 = vector.broadcast %20 : vector<1x128xf32> to vector<256x128xf32>
    %22 = arith.addf %19, %21 : vector<256x128xf32>
    %cst_15 = arith.constant 0.000000e+00 : f32
    %23 = vector.broadcast %cst_15 : f32 to vector<256x128xf32>
    %24 = arith.maximumf %22, %23 : vector<256x128xf32>
    %25 = arith.truncf %24 : vector<256x128xf32> to vector<256x128xbf16>
    %c0_16 = arith.constant 0 : index
    %c128 = arith.constant 128 : index
    %26 = vector.load %arg4[%c0_16, %c128] : memref<128x384xbf16, #tpu.memory_space<vmem>>, vector<128x128xbf16>
    %cst_17 = arith.constant dense<0.000000e+00> : vector<256x128xf32>
    %27 = tpu.matmul %25, %26, %cst_17 {dimension_numbers = #tpu.dot_dimension_numbers<[1], [0], [0], [1], [0, 0, 1, 1], [], []>} : vector<256x128xbf16>, vector<128x128xbf16>, vector<256x128xf32> -> vector<256x128xf32>
    %c0_18 = arith.constant 0 : index
    %c768 = arith.constant 768 : index
    %28 = vector.load %arg5[%c0_18, %c768] : memref<1x1024xf32, #tpu.memory_space<vmem>>, vector<1x128xf32>
    %29 = vector.broadcast %28 : vector<1x128xf32> to vector<256x128xf32>
    %30 = arith.addf %27, %29 : vector<256x128xf32>
    %cst_19 = arith.constant 0.000000e+00 : f32
    %31 = vector.broadcast %cst_19 : f32 to vector<256x128xf32>
    %32 = arith.maximumf %30, %31 : vector<256x128xf32>
    %33 = arith.truncf %32 : vector<256x128xf32> to vector<256x128xbf16>
    %c0_20 = arith.constant 0 : index
    %c256 = arith.constant 256 : index
    %34 = vector.load %arg4[%c0_20, %c256] : memref<128x384xbf16, #tpu.memory_space<vmem>>, vector<128x128xbf16>
    %cst_21 = arith.constant dense<0.000000e+00> : vector<256x128xf32>
    %35 = tpu.matmul %33, %34, %cst_21 {dimension_numbers = #tpu.dot_dimension_numbers<[1], [0], [0], [1], [0, 0, 1, 1], [], []>} : vector<256x128xbf16>, vector<128x128xbf16>, vector<256x128xf32> -> vector<256x128xf32>
    %c0_22 = arith.constant 0 : index
    %c896 = arith.constant 896 : index
    %36 = vector.load %arg5[%c0_22, %c896] : memref<1x1024xf32, #tpu.memory_space<vmem>>, vector<1x128xf32>
    %37 = vector.broadcast %36 : vector<1x128xf32> to vector<256x128xf32>
    %38 = arith.addf %35, %37 : vector<256x128xf32>
    %cst_23 = arith.constant 0.000000e+00 : f32
    %39 = vector.broadcast %cst_23 : f32 to vector<256x128xf32>
    %40 = arith.maximumf %38, %39 : vector<256x128xf32>
    %c0_24 = arith.constant 0 : index
    %c0_25 = arith.constant 0 : index
    %41 = vector.load %arg6[%c0_24, %c0_25] : memref<256x128xf32, #tpu.memory_space<vmem>>, vector<256x128xf32>
    tpu.vector_store %arg6[%c0_24, %c0_25], %40 {strides = array<i32>} : memref<256x128xf32, #tpu.memory_space<vmem>>, vector<256x128xf32>,
    return
  }
  func.func @transform_0(%arg0: i32) -> (i32, i32) {
    %c0_i32 = arith.constant 0 : i32
    %c0_i32_0 = arith.constant 0 : i32
    return %arg0, %c0_i32 : i32, i32
  }
  func.func @transform_1(%arg0: i32) -> (i32, i32) {
    %c0_i32 = arith.constant 0 : i32
    %c0_i32_0 = arith.constant 0 : i32
    %c0_i32_1 = arith.constant 0 : i32
    return %c0_i32, %c0_i32_0 : i32, i32
  }
  func.func @transform_2(%arg0: i32) -> (i32, i32) {
    %c0_i32 = arith.constant 0 : i32
    %c0_i32_0 = arith.constant 0 : i32
    %c0_i32_1 = arith.constant 0 : i32
    return %c0_i32, %c0_i32_0 : i32, i32
  }
  func.func @transform_3(%arg0: i32) -> (i32, i32) {
    %c0_i32 = arith.constant 0 : i32
    %c0_i32_0 = arith.constant 0 : i32
    %c0_i32_1 = arith.constant 0 : i32
    return %c0_i32, %c0_i32_0 : i32, i32
  }
  func.func @transform_4(%arg0: i32) -> (i32, i32) {
    %c0_i32 = arith.constant 0 : i32
    %c0_i32_0 = arith.constant 0 : i32
    %c0_i32_1 = arith.constant 0 : i32
    return %c0_i32, %c0_i32_0 : i32, i32
  }
  func.func @transform_5(%arg0: i32) -> (i32, i32) {
    %c0_i32 = arith.constant 0 : i32
    %c0_i32_0 = arith.constant 0 : i32
    return %arg0, %c0_i32 : i32, i32
  }
}

</mosaic_0001>

<llo_original>
// kernel: tpu_custom_call.1
$region0: #{tpu_custom_call.1}
  #allocation0 [shape = 'u32[]', space=smem, size = 0x4, offset = 0x4, fixed_abs, tag = 'smem constant byte address 0x4 - core index']
  #allocation1 [shape = 'u32[144,128]{1,0:T(1,128)}', space=vmem, size = 0x12000, scoped, tag = 'internal scratch']
  %s0 = inlined_call_operand.hbm [shape: f32[256,256], index: 0, kind: input, shape index: {}]
  %s1 = inlined_call_operand.hbm [shape: bf16[256,512], index: 1, kind: input, shape index: {}]
  %s2 = inlined_call_operand.hbm [shape: bf16[512,128], index: 2, kind: input, shape index: {}]
  %s3 = inlined_call_operand.hbm [shape: bf16[128,384], index: 3, kind: input, shape index: {}]
  %s4 = inlined_call_operand.hbm [shape: f32[1,1024], index: 4, kind: input, shape index: {}]
  %s5 = inlined_call_operand.hbm [shape: f32[256,128], index: 5, kind: output, shape index: {}]
  %s6 = sld [smem:[#allocation0]]
  $region50: #{tpu_custom_call.1} parent=0
    _
  %s8 = ssub.s32 1, %s6
  %s9 = scalar_select 0, %s8, %s6
  $region1: #{tpu_custom_call.1} parent=0
    #allocation2 [shape = 'u8[262144]{0}', space=vmem, size = 0x40000, scoped, tag = 'input window, operand 0, single buffered']
    #allocation3 [shape = 's32[1]{0}', space=sflag, size = 0x4, scoped, tag = 'scoped memory for tpu_custom_call.1']
    #allocation4 [shape = 's32[1]{0}', space=sflag, size = 0x4, scoped, tag = 'scoped memory for tpu_custom_call.1']
    #allocation5 [shape = 'u8[262144]{0}', space=vmem, size = 0x40000, scoped, tag = 'input window, operand 1, single buffered']
    #allocation6 [shape = 's32[1]{0}', space=sflag, size = 0x4, scoped, tag = 'scoped memory for tpu_custom_call.1']
    #allocation7 [shape = 'u8[131072]{0}', space=vmem, size = 0x20000, scoped, tag = 'input window, operand 2, single buffered']
    #allocation8 [shape = 'u8[98304]{0}', space=vmem, size = 0x18000, scoped, tag = 'input window, operand 3, single buffered']
    #allocation9 [shape = 's32[1]{0}', space=sflag, size = 0x4, scoped, tag = 'scoped memory for tpu_custom_call.1']
    #allocation10 [shape = 'u8[4096]{0}', space=vmem, size = 0x1000, scoped, tag = 'input window, operand 4, single buffered']
    #allocation11 [shape = 'u8[131072]{0}', space=vmem, size = 0x20000, scoped, tag = 'output window, operand 0, single buffered']
    %10 = vsyncpa [#allocation3], 0
    %11 = vsyncpa [#allocation6], 0
    %12 = vsyncpa [#allocation9], 0
    %13 = vsyncpa [#allocation4], 0
    // Predicated region
    $region2: #{tpu_custom_call.1} parent=1 // pred_check
      _
    $region3: #{tpu_custom_call.1} parent=1 // pred_check_branch
      %15 = sbr.rel (0) target = $region5
    $region4: #{tpu_custom_call.1} parent=1 // pred_region
      %s17 = ssub.s32 8192, 8192
      %18 = vsyncadd [#allocation3], %s17
      %s19 = sshll.u32 [#allocation2], 4
      %s20 = int_to_ptr.vmem [resolvable:$true] %s19
      %25 = dma.hbm_to_vmem [thread:$0]  %s0, 8192, %s20, [#allocation3], 256, 256, 16
    $region5: #{tpu_custom_call.1} parent=1 // pred_fallthru
      _
    // Predicated region
    $region6: #{tpu_custom_call.1} parent=1 // pred_check
      _
    $region7: #{tpu_custom_call.1} parent=1 // pred_check_branch
      %27 = sbr.rel (0) target = $region9
    $region8: #{tpu_custom_call.1} parent=1 // pred_region
      %s29 = ssub.s32 8192, 8192
      %30 = vsyncadd [#allocation6], %s29
      %s31 = sshll.u32 [#allocation5], 4
      %s32 = int_to_ptr.vmem [resolvable:$true] %s31
      %37 = dma.hbm_to_vmem [thread:$0]  %s1, 8192, %s32, [#allocation6], 256, 256, 16
    $region9: #{tpu_custom_call.1} parent=1 // pred_fallthru
      _
    // Predicated region
    $region10: #{tpu_custom_call.1} parent=1 // pred_check
      _
    $region11: #{tpu_custom_call.1} parent=1 // pred_check_branch
      %39 = sbr.rel (0) target = $region13
    $region12: #{tpu_custom_call.1} parent=1 // pred_region
      %s41 = ssub.s32 4096, 4096
      %42 = vsyncadd [#allocation6], %s41
      %s43 = sshll.u32 [#allocation7], 4
      %s44 = int_to_ptr.vmem [resolvable:$true] %s43
      %49 = dma.hbm_to_vmem [thread:$0]  %s2, 4096, %s44, [#allocation6], 64, 64, 4
    $region13: #{tpu_custom_call.1} parent=1 // pred_fallthru
      _
    // Predicated region
    $region14: #{tpu_custom_call.1} parent=1 // pred_check
      _
    $region15: #{tpu_custom_call.1} parent=1 // pred_check_branch
      %51 = sbr.rel (0) target = $region17
    $region16: #{tpu_custom_call.1} parent=1 // pred_region
      %s53 = ssub.s32 3072, 3072
      %54 = vsyncadd [#allocation9], %s53
      %s55 = sshll.u32 [#allocation8], 4
      %s56 = int_to_ptr.vmem [resolvable:$true] %s55
      %61 = dma.hbm_to_vmem [thread:$0]  %s3, 3072, %s56, [#allocation9], 192, 192, 12
    $region17: #{tpu_custom_call.1} parent=1 // pred_fallthru
      _
    // Predicated region
    $region18: #{tpu_custom_call.1} parent=1 // pred_check
      _
    $region19: #{tpu_custom_call.1} parent=1 // pred_check_branch
      %63 = sbr.rel (0) target = $region21
    $region20: #{tpu_custom_call.1} parent=1 // pred_region
      %s65 = ssub.s32 128, 128
      %66 = vsyncadd [#allocation9], %s65
      %s68 = sshll.u32 [#allocation10], 4
      %s69 = int_to_ptr.vmem [resolvable:$true] %s68
      %71 = dma.hbm_to_vmem [thread:$0]  %s4, 128, %s69, [#allocation9]
    $region21: #{tpu_custom_call.1} parent=1 // pred_fallthru
      _
    // Predicated region
    $region22: #{tpu_custom_call.1} parent=1 // pred_check
      _
    $region23: #{tpu_custom_call.1} parent=1 // pred_check_branch
      %73 = sbr.rel (0) target = $region25
    $region24: #{tpu_custom_call.1} parent=1 // pred_region
      %74 = dma.done [#allocation3], 8192
    $region25: #{tpu_custom_call.1} parent=1 // pred_fallthru
      _
    // Predicated region
    $region26: #{tpu_custom_call.1} parent=1 // pred_check
      _
    $region27: #{tpu_custom_call.1} parent=1 // pred_check_branch
      %76 = sbr.rel (0) target = $region29
    $region28: #{tpu_custom_call.1} parent=1 // pred_region
      %77 = dma.done [#allocation6], 8192
    $region29: #{tpu_custom_call.1} parent=1 // pred_fallthru
      _
    // Predicated region
    $region30: #{tpu_custom_call.1} parent=1 // pred_check
      _
    $region31: #{tpu_custom_call.1} parent=1 // pred_check_branch
      %79 = sbr.rel (0) target = $region33
    $region32: #{tpu_custom_call.1} parent=1 // pred_region
      %80 = dma.done [#allocation6], 4096
    $region33: #{tpu_custom_call.1} parent=1 // pred_fallthru
      _
    // Predicated region
    $region34: #{tpu_custom_call.1} parent=1 // pred_check
      _
    $region35: #{tpu_custom_call.1} parent=1 // pred_check_branch
      %82 = sbr.rel (0) target = $region37
    $region36: #{tpu_custom_call.1} parent=1 // pred_region
      %83 = dma.done [#allocation9], 3072
    $region37: #{tpu_custom_call.1} parent=1 // pred_fallthru
      _
    // Predicated region
    $region38: #{tpu_custom_call.1} parent=1 // pred_check
      _
    $region39: #{tpu_custom_call.1} parent=1 // pred_check_branch
      %85 = sbr.rel (0) target = $region41
    $region40: #{tpu_custom_call.1} parent=1 // pred_region
      %86 = dma.done [#allocation9], 128
    $region41: #{tpu_custom_call.1} parent=1 // pred_fallthru
      _
    %v88 = vld [vmem:[#allocation2] sm:$0xff]
    %v89 = vld [vmem:[#allocation2 + $0x8] sm:$0xff]
    %v90 = vld [vmem:[#allocation2 + $0x10] sm:$0xff]
    %v91 = vld [vmem:[#allocation2 + $0x18] sm:$0xff]
    %v92 = vld [vmem:[#allocation2 + $0x20] sm:$0xff]
    %v93 = vld [vmem:[#allocation2 + $0x28] sm:$0xff]
    %v94 = vld [vmem:[#allocation2 + $0x30] sm:$0xff]
    %v95 = vld [vmem:[#allocation2 + $0x38] sm:$0xff]
    %v96 = vld [vmem:[#allocation2 + $0x40] sm:$0xff]
    %v97 = vld [vmem:[#allocation2 + $0x48] sm:$0xff]
    %v98 = vld [vmem:[#allocation2 + $0x50] sm:$0xff]
    %v99 = vld [vmem:[#allocation2 + $0x58] sm:$0xff]
    %v100 = vld [vmem:[#allocation2 + $0x60] sm:$0xff]
    %v101 = vld [vmem:[#allocation2 + $0x68] sm:$0xff]
    %v102 = vld [vmem:[#allocation2 + $0x70] sm:$0xff]
    %v103 = vld [vmem:[#allocation2 + $0x78] sm:$0xff]
    %v104 = vld [vmem:[#allocation2 + $0x80] sm:$0xff]
    %v105 = vld [vmem:[#allocation2 + $0x88] sm:$0xff]
    %v106 = vld [vmem:[#allocation2 + $0x90] sm:$0xff]
    %v107 = vld [vmem:[#allocation2 + $0x98] sm:$0xff]
    %v108 = vld [vmem:[#allocation2 + $0xa0] sm:$0xff]
    %v109 = vld [vmem:[#allocation2 + $0xa8] sm:$0xff]
    %v110 = vld [vmem:[#allocation2 + $0xb0] sm:$0xff]
    %v111 = vld [vmem:[#allocation2 + $0xb8] sm:$0xff]
    %v112 = vld [vmem:[#allocation2 + $0xc0] sm:$0xff]
    %v113 = vld [vmem:[#allocation2 + $0xc8] sm:$0xff]
    %v114 = vld [vmem:[#allocation2 + $0xd0] sm:$0xff]
    %v115 = vld [vmem:[#allocation2 + $0xd8] sm:$0xff]
    %v116 = vld [vmem:[#allocation2 + $0xe0] sm:$0xff]
    %v117 = vld [vmem:[#allocation2 + $0xe8] sm:$0xff]
    %v118 = vld [vmem:[#allocation2 + $0xf0] sm:$0xff]
    %v119 = vld [vmem:[#allocation2 + $0xf8] sm:$0xff]
    %v120 = vld [vmem:[#allocation2 + $0x100] sm:$0xff]
    %v121 = vld [vmem:[#allocation2 + $0x108] sm:$0xff]
    %v122 = vld [vmem:[#allocation2 + $0x110] sm:$0xff]
    %v123 = vld [vmem:[#allocation2 + $0x118] sm:$0xff]
    %v124 = vld [vmem:[#allocation2 + $0x120] sm:$0xff]
    %v125 = vld [vmem:[#allocation2 + $0x128] sm:$0xff]
    %v126 = vld [vmem:[#allocation2 + $0x130] sm:$0xff]
    %v127 = vld [vmem:[#allocation2 + $0x138] sm:$0xff]
    %v128 = vld [vmem:[#allocation2 + $0x140] sm:$0xff]
    %v129 = vld [vmem:[#allocation2 + $0x148] sm:$0xff]
    %v130 = vld [vmem:[#allocation2 + $0x150] sm:$0xff]
    %v131 = vld [vmem:[#allocation2 + $0x158] sm:$0xff]
    %v132 = vld [vmem:[#allocation2 + $0x160] sm:$0xff]
    %v133 = vld [vmem:[#allocation2 + $0x168] sm:$0xff]
    %v134 = vld [vmem:[#allocation2 + $0x170] sm:$0xff]
    %v135 = vld [vmem:[#allocation2 + $0x178] sm:$0xff]
    %v136 = vld [vmem:[#allocation2 + $0x180] sm:$0xff]
    %v137 = vld [vmem:[#allocation2 + $0x188] sm:$0xff]
    %v138 = vld [vmem:[#allocation2 + $0x190] sm:$0xff]
    %v139 = vld [vmem:[#allocation2 + $0x198] sm:$0xff]
    %v140 = vld [vmem:[#allocation2 + $0x1a0] sm:$0xff]
    %v141 = vld [vmem:[#allocation2 + $0x1a8] sm:$0xff]
    %v142 = vld [vmem:[#allocation2 + $0x1b0] sm:$0xff]
    %v143 = vld [vmem:[#allocation2 + $0x1b8] sm:$0xff]
    %v144 = vld [vmem:[#allocation2 + $0x1c0] sm:$0xff]
    %v145 = vld [vmem:[#allocation2 + $0x1c8] sm:$0xff]
    %v146 = vld [vmem:[#allocation2 + $0x1d0] sm:$0xff]
    %v147 = vld [vmem:[#allocation2 + $0x1d8] sm:$0xff]
    %v148 = vld [vmem:[#allocation2 + $0x1e0] sm:$0xff]
    %v149 = vld [vmem:[#allocation2 + $0x1e8] sm:$0xff]
    %v150 = vld [vmem:[#allocation2 + $0x1f0] sm:$0xff]
    %v151 = vld [vmem:[#allocation2 + $0x1f8] sm:$0xff]
    %v152 = vpack.c.bf16 %v90, %v88
    %v153 = vpack.c.bf16 %v91, %v89
    %v154 = vpack.c.bf16 %v94, %v92
    %v155 = vpack.c.bf16 %v95, %v93
    %v156 = vpack.c.bf16 %v98, %v96
    %v157 = vpack.c.bf16 %v99, %v97
    %v158 = vpack.c.bf16 %v102, %v100
    %v159 = vpack.c.bf16 %v103, %v101
    %v160 = vpack.c.bf16 %v106, %v104
    %v161 = vpack.c.bf16 %v107, %v105
    %v162 = vpack.c.bf16 %v110, %v108
    %v163 = vpack.c.bf16 %v111, %v109
    %v164 = vpack.c.bf16 %v114, %v112
    %v165 = vpack.c.bf16 %v115, %v113
    %v166 = vpack.c.bf16 %v118, %v116
    %v167 = vpack.c.bf16 %v119, %v117
    %v168 = vpack.c.bf16 %v122, %v120
    %v169 = vpack.c.bf16 %v123, %v121
    %v170 = vpack.c.bf16 %v126, %v124
    %v171 = vpack.c.bf16 %v127, %v125
    %v172 = vpack.c.bf16 %v130, %v128
    %v173 = vpack.c.bf16 %v131, %v129
    %v174 = vpack.c.bf16 %v134, %v132
    %v175 = vpack.c.bf16 %v135, %v133
    %v176 = vpack.c.bf16 %v138, %v136
    %v177 = vpack.c.bf16 %v139, %v137
    %v178 = vpack.c.bf16 %v142, %v140
    %v179 = vpack.c.bf16 %v143, %v141
    %v180 = vpack.c.bf16 %v146, %v144
    %v181 = vpack.c.bf16 %v147, %v145
    %v182 = vpack.c.bf16 %v150, %v148
    %v183 = vpack.c.bf16 %v151, %v149
    %v184 = vld [vmem:[#allocation5] sm:$0xff]
    %v185 = vld [vmem:[#allocation5 + $0x8] sm:$0xff]
    %v186 = vld [vmem:[#allocation5 + $0x10] sm:$0xff]
    %v187 = vld [vmem:[#allocation5 + $0x18] sm:$0xff]
    %v188 = vld [vmem:[#allocation5 + $0x20] sm:$0xff]
    %v189 = vld [vmem:[#allocation5 + $0x28] sm:$0xff]
    %v190 = vld [vmem:[#allocation5 + $0x30] sm:$0xff]
    %v191 = vld [vmem:[#allocation5 + $0x38] sm:$0xff]
    %v192 = vld [vmem:[#allocation5 + $0x40] sm:$0xff]
    %v193 = vld [vmem:[#allocation5 + $0x48] sm:$0xff]
    %v194 = vld [vmem:[#allocation5 + $0x50] sm:$0xff]
    %v195 = vld [vmem:[#allocation5 + $0x58] sm:$0xff]
    %v196 = vld [vmem:[#allocation5 + $0x60] sm:$0xff]
    %v197 = vld [vmem:[#allocation5 + $0x68] sm:$0xff]
    %v198 = vld [vmem:[#allocation5 + $0x70] sm:$0xff]
    %v199 = vld [vmem:[#allocation5 + $0x78] sm:$0xff]
    %v200 = vld [vmem:[#allocation5 + $0x80] sm:$0xff]
    %v201 = vld [vmem:[#allocation5 + $0x88] sm:$0xff]
    %v202 = vld [vmem:[#allocation5 + $0x90] sm:$0xff]
    %v203 = vld [vmem:[#allocation5 + $0x98] sm:$0xff]
    %v204 = vld [vmem:[#allocation5 + $0xa0] sm:$0xff]
    %v205 = vld [vmem:[#allocation5 + $0xa8] sm:$0xff]
    %v206 = vld [vmem:[#allocation5 + $0xb0] sm:$0xff]
    %v207 = vld [vmem:[#allocation5 + $0xb8] sm:$0xff]
    %v208 = vld [vmem:[#allocation5 + $0xc0] sm:$0xff]
    %v209 = vld [vmem:[#allocation5 + $0xc8] sm:$0xff]
    %v210 = vld [vmem:[#allocation5 + $0xd0] sm:$0xff]
    %v211 = vld [vmem:[#allocation5 + $0xd8] sm:$0xff]
    %v212 = vld [vmem:[#allocation5 + $0xe0] sm:$0xff]
    %v213 = vld [vmem:[#allocation5 + $0xe8] sm:$0xff]
    %v214 = vld [vmem:[#allocation5 + $0xf0] sm:$0xff]
    %v215 = vld [vmem:[#allocation5 + $0xf8] sm:$0xff]
    %v216 = vld [vmem:[#allocation5 + $0x100] sm:$0xff]
    %v217 = vld [vmem:[#allocation5 + $0x108] sm:$0xff]
    %v218 = vld [vmem:[#allocation5 + $0x110] sm:$0xff]
    %v219 = vld [vmem:[#allocation5 + $0x118] sm:$0xff]
    %v220 = vld [vmem:[#allocation5 + $0x120] sm:$0xff]
    %v221 = vld [vmem:[#allocation5 + $0x128] sm:$0xff]
    %v222 = vld [vmem:[#allocation5 + $0x130] sm:$0xff]
    %v223 = vld [vmem:[#allocation5 + $0x138] sm:$0xff]
    %v224 = vld [vmem:[#allocation5 + $0x140] sm:$0xff]
    %v225 = vld [vmem:[#allocation5 + $0x148] sm:$0xff]
    %v226 = vld [vmem:[#allocation5 + $0x150] sm:$0xff]
    %v227 = vld [vmem:[#allocation5 + $0x158] sm:$0xff]
    %v228 = vld [vmem:[#allocation5 + $0x160] sm:$0xff]
    %v229 = vld [vmem:[#allocation5 + $0x168] sm:$0xff]
    %v230 = vld [vmem:[#allocation5 + $0x170] sm:$0xff]
    %v231 = vld [vmem:[#allocation5 + $0x178] sm:$0xff]
    %v232 = vld [vmem:[#allocation5 + $0x180] sm:$0xff]
    %v233 = vld [vmem:[#allocation5 + $0x188] sm:$0xff]
    %v234 = vld [vmem:[#allocation5 + $0x190] sm:$0xff]
    %v235 = vld [vmem:[#allocation5 + $0x198] sm:$0xff]
    %v236 = vld [vmem:[#allocation5 + $0x1a0] sm:$0xff]
    %v237 = vld [vmem:[#allocation5 + $0x1a8] sm:$0xff]
    %v238 = vld [vmem:[#allocation5 + $0x1b0] sm:$0xff]
    %v239 = vld [vmem:[#allocation5 + $0x1b8] sm:$0xff]
    %v240 = vld [vmem:[#allocation5 + $0x1c0] sm:$0xff]
    %v241 = vld [vmem:[#allocation5 + $0x1c8] sm:$0xff]
    %v242 = vld [vmem:[#allocation5 + $0x1d0] sm:$0xff]
    %v243 = vld [vmem:[#allocation5 + $0x1d8] sm:$0xff]
    %v244 = vld [vmem:[#allocation5 + $0x1e0] sm:$0xff]
    %v245 = vld [vmem:[#allocation5 + $0x1e8] sm:$0xff]
    %v246 = vld [vmem:[#allocation5 + $0x1f0] sm:$0xff]
    %v247 = vld [vmem:[#allocation5 + $0x1f8] sm:$0xff]
    %v248 = vld [vmem:[#allocation10] sm:$0xf]
    %v250 = vlaneseq
    %v251 = vshrl.u32 %v250, 7
    %v252 = vsub.s32 0, %v251
    %v253 = vrot.slane %v248, %v252
    %v254 = vlaneseq
    %v255 = vshrl.u32 %v254, 7
    %v256 = vsub.s32 1, %v255
    %v257 = vrot.slane %v248, %v256
    %v258 = vlaneseq
    %v259 = vshrl.u32 %v258, 7
    %v260 = vsub.s32 2, %v259
    %v261 = vrot.slane %v248, %v260
    %v262 = vlaneseq
    %v263 = vshrl.u32 %v262, 7
    %v264 = vsub.s32 3, %v263
    %v265 = vrot.slane %v248, %v264
    %v334 = vunpack.c.l.b16 %v184
    %v335 = vunpack.c.h.b16 %v184
    %v336 = vunpack.c.l.b16 %v185
    %v337 = vunpack.c.h.b16 %v185
    %v338 = vunpack.c.l.b16 %v186
    %v339 = vunpack.c.h.b16 %v186
    %v340 = vunpack.c.l.b16 %v187
    %v341 = vunpack.c.h.b16 %v187
    %v342 = vunpack.c.l.b16 %v188
    %v343 = vunpack.c.h.b16 %v188
    %v344 = vunpack.c.l.b16 %v189
    %v345 = vunpack.c.h.b16 %v189
    %v346 = vunpack.c.l.b16 %v190
    %v347 = vunpack.c.h.b16 %v190
    %v348 = vunpack.c.l.b16 %v191
    %v349 = vunpack.c.h.b16 %v191
    %v350 = vunpack.c.l.b16 %v192
    %v351 = vunpack.c.h.b16 %v192
    %v352 = vunpack.c.l.b16 %v193
    %v353 = vunpack.c.h.b16 %v193
    %v354 = vunpack.c.l.b16 %v194
    %v355 = vunpack.c.h.b16 %v194
    %v356 = vunpack.c.l.b16 %v195
    %v357 = vunpack.c.h.b16 %v195
    %v358 = vunpack.c.l.b16 %v196
    %v359 = vunpack.c.h.b16 %v196
    %v360 = vunpack.c.l.b16 %v197
    %v361 = vunpack.c.h.b16 %v197
    %v362 = vunpack.c.l.b16 %v198
    %v363 = vunpack.c.h.b16 %v198
    %v364 = vunpack.c.l.b16 %v199
    %v365 = vunpack.c.h.b16 %v199
    %v366 = vunpack.c.l.b16 %v200
    %v367 = vunpack.c.h.b16 %v200
    %v368 = vunpack.c.l.b16 %v201
    %v369 = vunpack.c.h.b16 %v201
    %v370 = vunpack.c.l.b16 %v202
    %v371 = vunpack.c.h.b16 %v202
    %v372 = vunpack.c.l.b16 %v203
    %v373 = vunpack.c.h.b16 %v203
    %v374 = vunpack.c.l.b16 %v204
    %v375 = vunpack.c.h.b16 %v204
    %v376 = vunpack.c.l.b16 %v205
    %v377 = vunpack.c.h.b16 %v205
    %v378 = vunpack.c.l.b16 %v206
    %v379 = vunpack.c.h.b16 %v206
    %v380 = vunpack.c.l.b16 %v207
    %v381 = vunpack.c.h.b16 %v207
    %v382 = vunpack.c.l.b16 %v208
    %v383 = vunpack.c.h.b16 %v208
    %v384 = vunpack.c.l.b16 %v209
    %v385 = vunpack.c.h.b16 %v209
    %v386 = vunpack.c.l.b16 %v210
    %v387 = vunpack.c.h.b16 %v210
    %v388 = vunpack.c.l.b16 %v211
    %v389 = vunpack.c.h.b16 %v211
    %v390 = vunpack.c.l.b16 %v212
    %v391 = vunpack.c.h.b16 %v212
    %v392 = vunpack.c.l.b16 %v213
    %v393 = vunpack.c.h.b16 %v213
    %v394 = vunpack.c.l.b16 %v214
    %v395 = vunpack.c.h.b16 %v214
    %v396 = vunpack.c.l.b16 %v215
    %v397 = vunpack.c.h.b16 %v215
    %v398 = vunpack.c.l.b16 %v216
    %v399 = vunpack.c.h.b16 %v216
    %v400 = vunpack.c.l.b16 %v217
    %v401 = vunpack.c.h.b16 %v217
    %v402 = vunpack.c.l.b16 %v218
    %v403 = vunpack.c.h.b16 %v218
    %v404 = vunpack.c.l.b16 %v219
    %v405 = vunpack.c.h.b16 %v219
    %v406 = vunpack.c.l.b16 %v220
    %v407 = vunpack.c.h.b16 %v220
    %v408 = vunpack.c.l.b16 %v221
    %v409 = vunpack.c.h.b16 %v221
    %v410 = vunpack.c.l.b16 %v222
    %v411 = vunpack.c.h.b16 %v222
    %v412 = vunpack.c.l.b16 %v223
    %v413 = vunpack.c.h.b16 %v223
    %v414 = vunpack.c.l.b16 %v224
    %v415 = vunpack.c.h.b16 %v224
    %v416 = vunpack.c.l.b16 %v225
    %v417 = vunpack.c.h.b16 %v225
    %v418 = vunpack.c.l.b16 %v226
    %v419 = vunpack.c.h.b16 %v226
    %v420 = vunpack.c.l.b16 %v227
    %v421 = vunpack.c.h.b16 %v227
    %v422 = vunpack.c.l.b16 %v228
    %v423 = vunpack.c.h.b16 %v228
    %v424 = vunpack.c.l.b16 %v229
    %v425 = vunpack.c.h.b16 %v229
    %v426 = vunpack.c.l.b16 %v230
    %v427 = vunpack.c.h.b16 %v230
    %v428 = vunpack.c.l.b16 %v231
    %v429 = vunpack.c.h.b16 %v231
    %v430 = vunpack.c.l.b16 %v232
    %v431 = vunpack.c.h.b16 %v232
    %v432 = vunpack.c.l.b16 %v233
    %v433 = vunpack.c.h.b16 %v233
    %v434 = vunpack.c.l.b16 %v234
    %v435 = vunpack.c.h.b16 %v234
    %v436 = vunpack.c.l.b16 %v235
    %v437 = vunpack.c.h.b16 %v235
    %v438 = vunpack.c.l.b16 %v236
    %v439 = vunpack.c.h.b16 %v236
    %v440 = vunpack.c.l.b16 %v237
    %v441 = vunpack.c.h.b16 %v237
    %v442 = vunpack.c.l.b16 %v238
    %v443 = vunpack.c.h.b16 %v238
    %v444 = vunpack.c.l.b16 %v239
    %v445 = vunpack.c.h.b16 %v239
    %v446 = vunpack.c.l.b16 %v240
    %v447 = vunpack.c.h.b16 %v240
    %v448 = vunpack.c.l.b16 %v241
    %v449 = vunpack.c.h.b16 %v241
    %v450 = vunpack.c.l.b16 %v242
    %v451 = vunpack.c.h.b16 %v242
    %v452 = vunpack.c.l.b16 %v243
    %v453 = vunpack.c.h.b16 %v243
    %v454 = vunpack.c.l.b16 %v244
    %v455 = vunpack.c.h.b16 %v244
    %v456 = vunpack.c.l.b16 %v245
    %v457 = vunpack.c.h.b16 %v245
    %v458 = vunpack.c.l.b16 %v246
    %v459 = vunpack.c.h.b16 %v246
    %v460 = vunpack.c.l.b16 %v247
    %v461 = vunpack.c.h.b16 %v247
    %v462 = vpack.c.b16 %v338, %v334
    %v463 = vpack.c.b16 %v339, %v335
    %v464 = vpack.c.b16 %v340, %v336
    %v465 = vpack.c.b16 %v341, %v337
    %v466 = vpack.c.b16 %v346, %v342
    %v467 = vpack.c.b16 %v347, %v343
    %v468 = vpack.c.b16 %v348, %v344
    %v469 = vpack.c.b16 %v349, %v345
    %v470 = vpack.c.b16 %v354, %v350
    %v471 = vpack.c.b16 %v355, %v351
    %v472 = vpack.c.b16 %v356, %v352
    %v473 = vpack.c.b16 %v357, %v353
    %v474 = vpack.c.b16 %v362, %v358
    %v475 = vpack.c.b16 %v363, %v359
    %v476 = vpack.c.b16 %v364, %v360
    %v477 = vpack.c.b16 %v365, %v361
    %v478 = vpack.c.b16 %v370, %v366
    %v479 = vpack.c.b16 %v371, %v367
    %v480 = vpack.c.b16 %v372, %v368
    %v481 = vpack.c.b16 %v373, %v369
    %v482 = vpack.c.b16 %v378, %v374
    %v483 = vpack.c.b16 %v379, %v375
    %v484 = vpack.c.b16 %v380, %v376
    %v485 = vpack.c.b16 %v381, %v377
    %v486 = vpack.c.b16 %v386, %v382
    %v487 = vpack.c.b16 %v387, %v383
    %v488 = vpack.c.b16 %v388, %v384
    %v489 = vpack.c.b16 %v389, %v385
    %v490 = vpack.c.b16 %v394, %v390
    %v491 = vpack.c.b16 %v395, %v391
    %v492 = vpack.c.b16 %v396, %v392
    %v493 = vpack.c.b16 %v397, %v393
    %v494 = vpack.c.b16 %v402, %v398
    %v495 = vpack.c.b16 %v403, %v399
    %v496 = vpack.c.b16 %v404, %v400
    %v497 = vpack.c.b16 %v405, %v401
    %v498 = vpack.c.b16 %v410, %v406
    %v499 = vpack.c.b16 %v411, %v407
    %v500 = vpack.c.b16 %v412, %v408
    %v501 = vpack.c.b16 %v413, %v409
    %v502 = vpack.c.b16 %v418, %v414
    %v503 = vpack.c.b16 %v419, %v415
    %v504 = vpack.c.b16 %v420, %v416
    %v505 = vpack.c.b16 %v421, %v417
    %v506 = vpack.c.b16 %v426, %v422
    %v507 = vpack.c.b16 %v427, %v423
    %v508 = vpack.c.b16 %v428, %v424
    %v509 = vpack.c.b16 %v429, %v425
    %v510 = vpack.c.b16 %v434, %v430
    %v511 = vpack.c.b16 %v435, %v431
    %v512 = vpack.c.b16 %v436, %v432
    %v513 = vpack.c.b16 %v437, %v433
    %v514 = vpack.c.b16 %v442, %v438
    %v515 = vpack.c.b16 %v443, %v439
    %v516 = vpack.c.b16 %v444, %v440
    %v517 = vpack.c.b16 %v445, %v441
    %v518 = vpack.c.b16 %v450, %v446
    %v519 = vpack.c.b16 %v451, %v447
    %v520 = vpack.c.b16 %v452, %v448
    %v521 = vpack.c.b16 %v453, %v449
    %v522 = vpack.c.b16 %v458, %v454
    %v523 = vpack.c.b16 %v459, %v455
    %v524 = vpack.c.b16 %v460, %v456
    %v525 = vpack.c.b16 %v461, %v457
    %590 = vmatprep.subr.bf16.mxu0 %v491
    %591 = vmatpush1.bf16.msra.mxu0 %v490
    %592 = vmatprep.subr.bf16.mxu0 %v487
    %593 = vmatpush1.bf16.msra.mxu0 %v486
    %594 = vmatprep.subr.bf16.mxu0 %v483
    %595 = vmatpush1.bf16.msra.mxu0 %v482
    %596 = vmatprep.subr.bf16.mxu0 %v479
    %597 = vmatpush1.bf16.msra.mxu0 %v478
    %598 = vmatprep.subr.bf16.mxu0 %v475
    %599 = vmatpush1.bf16.msra.mxu0 %v474
    %600 = vmatprep.subr.bf16.mxu0 %v471
    %601 = vmatpush1.bf16.msra.mxu0 %v470
    %602 = vmatprep.subr.bf16.mxu0 %v467
    %603 = vmatpush1.bf16.msra.mxu0 %v466
    %604 = vmatprep.subr.bf16.mxu0 %v463
    %605 = vmatpush1.bf16.msra.mxu0 %v462
    %606 = vmatprep.subr.bf16.mxu0 %v523
    %607 = vmatpush2.bf16.msra.mxu0 %v522
    %608 = vmatprep.subr.bf16.mxu0 %v519
    %609 = vmatpush2.bf16.msra.mxu0 %v518
    %610 = vmatprep.subr.bf16.mxu0 %v515
    %611 = vmatpush2.bf16.msra.mxu0 %v514
    %612 = vmatprep.subr.bf16.mxu0 %v511
    %613 = vmatpush2.bf16.msra.mxu0 %v510
    %614 = vmatprep.subr.bf16.mxu0 %v507
    %615 = vmatpush2.bf16.msra.mxu0 %v506
    %616 = vmatprep.subr.bf16.mxu0 %v503
    %617 = vmatpush2.bf16.msra.mxu0 %v502
    %618 = vmatprep.subr.bf16.mxu0 %v499
    %619 = vmatpush2.bf16.msra.mxu0 %v498
    %620 = vmatprep.subr.bf16.mxu0 %v495
    %621 = vmatpush2.bf16.msra.mxu0 %v494
    %622 = vmatprep.mubr.bf16.mxu0 %v153
    %623 = vmatmul.mubr.bf16.gmra.mxu0 %v152
    %v624 = vpop.f32.mrf.mxu0
    %v625 = vadd.f32 %v253, %v624
    %v626 = vpop.f32.mrf.mxu0
    %v627 = vadd.f32 %v257, %v626
    %v628 = vpop.f32.mrf.mxu0
    %v629 = vadd.f32 %v253, %v628
    %v630 = vpop.f32.mrf.mxu0
    %v631 = vadd.f32 %v257, %v630
    %632 = vmatprep.mubr.bf16.mxu0 %v155
    %633 = vmatmul.mubr.bf16.gmra.mxu0 %v154
    %v634 = vpop.f32.mrf.mxu0
    %v635 = vadd.f32 %v253, %v634
    %v636 = vpop.f32.mrf.mxu0
    %v637 = vadd.f32 %v257, %v636
    %v638 = vpop.f32.mrf.mxu0
    %v639 = vadd.f32 %v253, %v638
    %v640 = vpop.f32.mrf.mxu0
    %v641 = vadd.f32 %v257, %v640
    %642 = vmatprep.mubr.bf16.mxu0 %v157
    %643 = vmatmul.mubr.bf16.gmra.mxu0 %v156
    %v644 = vpop.f32.mrf.mxu0
    %v645 = vadd.f32 %v253, %v644
    %v646 = vpop.f32.mrf.mxu0
    %v647 = vadd.f32 %v257, %v646
    %v648 = vpop.f32.mrf.mxu0
    %v649 = vadd.f32 %v253, %v648
    %v650 = vpop.f32.mrf.mxu0
    %v651 = vadd.f32 %v257, %v650
    %652 = vmatprep.mubr.bf16.mxu0 %v159
    %653 = vmatmul.mubr.bf16.gmra.mxu0 %v158
    %v654 = vpop.f32.mrf.mxu0
    %v655 = vadd.f32 %v253, %v654
    %v656 = vpop.f32.mrf.mxu0
    %v657 = vadd.f32 %v257, %v656
    %v658 = vpop.f32.mrf.mxu0
    %v659 = vadd.f32 %v253, %v658
    %v660 = vpop.f32.mrf.mxu0
    %v661 = vadd.f32 %v257, %v660
    %662 = vmatprep.mubr.bf16.mxu0 %v161
    %663 = vmatmul.mubr.bf16.gmra.mxu0 %v160
    %v664 = vpop.f32.mrf.mxu0
    %v665 = vadd.f32 %v253, %v664
    %v666 = vpop.f32.mrf.mxu0
    %v667 = vadd.f32 %v257, %v666
    %v668 = vpop.f32.mrf.mxu0
    %v669 = vadd.f32 %v253, %v668
    %v670 = vpop.f32.mrf.mxu0
    %v671 = vadd.f32 %v257, %v670
    %672 = vmatprep.mubr.bf16.mxu0 %v163
    %673 = vmatmul.mubr.bf16.gmra.mxu0 %v162
    %v674 = vpop.f32.mrf.mxu0
    %v675 = vadd.f32 %v253, %v674
    %v676 = vpop.f32.mrf.mxu0
    %v677 = vadd.f32 %v257, %v676
    %v678 = vpop.f32.mrf.mxu0
    %v679 = vadd.f32 %v253, %v678
    %v680 = vpop.f32.mrf.mxu0
    %v681 = vadd.f32 %v257, %v680
    %682 = vmatprep.mubr.bf16.mxu0 %v165
    %683 = vmatmul.mubr.bf16.gmra.mxu0 %v164
    %v684 = vpop.f32.mrf.mxu0
    %v685 = vadd.f32 %v253, %v684
    %v686 = vpop.f32.mrf.mxu0
    %v687 = vadd.f32 %v257, %v686
    %v688 = vpop.f32.mrf.mxu0
    %v689 = vadd.f32 %v253, %v688
    %v690 = vpop.f32.mrf.mxu0
    %v691 = vadd.f32 %v257, %v690
    %692 = vmatprep.mubr.bf16.mxu0 %v167
    %693 = vmatmul.mubr.bf16.gmra.mxu0 %v166
    %v694 = vpop.f32.mrf.mxu0
    %v695 = vadd.f32 %v253, %v694
    %v696 = vpop.f32.mrf.mxu0
    %v697 = vadd.f32 %v257, %v696
    %v698 = vpop.f32.mrf.mxu0
    %v699 = vadd.f32 %v253, %v698
    %v700 = vpop.f32.mrf.mxu0
    %v701 = vadd.f32 %v257, %v700
    %702 = vmatprep.mubr.bf16.mxu0 %v169
    %703 = vmatmul.mubr.bf16.gmra.mxu0 %v168
    %v704 = vpop.f32.mrf.mxu0
    %v705 = vadd.f32 %v253, %v704
    %v706 = vpop.f32.mrf.mxu0
    %v707 = vadd.f32 %v257, %v706
    %v708 = vpop.f32.mrf.mxu0
    %v709 = vadd.f32 %v253, %v708
    %v710 = vpop.f32.mrf.mxu0
    %v711 = vadd.f32 %v257, %v710
    %712 = vmatprep.mubr.bf16.mxu0 %v171
    %713 = vmatmul.mubr.bf16.gmra.mxu0 %v170
    %v714 = vpop.f32.mrf.mxu0
    %v715 = vadd.f32 %v253, %v714
    %v716 = vpop.f32.mrf.mxu0
    %v717 = vadd.f32 %v257, %v716
    %v718 = vpop.f32.mrf.mxu0
    %v719 = vadd.f32 %v253, %v718
    %v720 = vpop.f32.mrf.mxu0
    %v721 = vadd.f32 %v257, %v720
    %722 = vmatprep.mubr.bf16.mxu0 %v173
    %723 = vmatmul.mubr.bf16.gmra.mxu0 %v172
    %v724 = vpop.f32.mrf.mxu0
    %v725 = vadd.f32 %v253, %v724
    %v726 = vpop.f32.mrf.mxu0
    %v727 = vadd.f32 %v257, %v726
    %v728 = vpop.f32.mrf.mxu0
    %v729 = vadd.f32 %v253, %v728
    %v730 = vpop.f32.mrf.mxu0
    %v731 = vadd.f32 %v257, %v730
    %732 = vmatprep.mubr.bf16.mxu0 %v175
    %733 = vmatmul.mubr.bf16.gmra.mxu0 %v174
    %v734 = vpop.f32.mrf.mxu0
    %v735 = vadd.f32 %v253, %v734
    %v736 = vpop.f32.mrf.mxu0
    %v737 = vadd.f32 %v257, %v736
    %v738 = vpop.f32.mrf.mxu0
    %v739 = vadd.f32 %v253, %v738
    %v740 = vpop.f32.mrf.mxu0
    %v741 = vadd.f32 %v257, %v740
    %742 = vmatprep.mubr.bf16.mxu0 %v177
    %743 = vmatmul.mubr.bf16.gmra.mxu0 %v176
    %v744 = vpop.f32.mrf.mxu0
    %v745 = vadd.f32 %v253, %v744
    %v746 = vpop.f32.mrf.mxu0
    %v747 = vadd.f32 %v257, %v746
    %v748 = vpop.f32.mrf.mxu0
    %v749 = vadd.f32 %v253, %v748
    %v750 = vpop.f32.mrf.mxu0
    %v751 = vadd.f32 %v257, %v750
    %752 = vmatprep.mubr.bf16.mxu0 %v179
    %753 = vmatmul.mubr.bf16.gmra.mxu0 %v178
    %v754 = vpop.f32.mrf.mxu0
    %v755 = vadd.f32 %v253, %v754
    %v756 = vpop.f32.mrf.mxu0
    %v757 = vadd.f32 %v257, %v756
    %v758 = vpop.f32.mrf.mxu0
    %v759 = vadd.f32 %v253, %v758
    %v760 = vpop.f32.mrf.mxu0
    %v761 = vadd.f32 %v257, %v760
    %762 = vmatprep.mubr.bf16.mxu0 %v181
    %763 = vmatmul.mubr.bf16.gmra.mxu0 %v180
    %v764 = vpop.f32.mrf.mxu0
    %v765 = vadd.f32 %v253, %v764
    %v766 = vpop.f32.mrf.mxu0
    %v767 = vadd.f32 %v257, %v766
    %v768 = vpop.f32.mrf.mxu0
    %v769 = vadd.f32 %v253, %v768
    %v770 = vpop.f32.mrf.mxu0
    %v771 = vadd.f32 %v257, %v770
    %772 = vmatprep.mubr.bf16.mxu0 %v183
    %773 = vmatmul.mubr.bf16.gmra.mxu0 %v182
    %v774 = vpop.f32.mrf.mxu0
    %v775 = vadd.f32 %v253, %v774
    %v776 = vpop.f32.mrf.mxu0
    %v777 = vadd.f32 %v257, %v776
    %v778 = vpop.f32.mrf.mxu0
    %v779 = vadd.f32 %v253, %v778
    %v780 = vpop.f32.mrf.mxu0
    %v781 = vadd.f32 %v257, %v780
    %782 = vdwg.mxu0
    %783 = vmatprep.subr.bf16.mxu0 %v493
    %784 = vmatpush1.bf16.msra.mxu0 %v492
    %785 = vmatprep.subr.bf16.mxu0 %v489
    %786 = vmatpush1.bf16.msra.mxu0 %v488
    %787 = vmatprep.subr.bf16.mxu0 %v485
    %788 = vmatpush1.bf16.msra.mxu0 %v484
    %789 = vmatprep.subr.bf16.mxu0 %v481
    %790 = vmatpush1.bf16.msra.mxu0 %v480
    %791 = vmatprep.subr.bf16.mxu0 %v477
    %792 = vmatpush1.bf16.msra.mxu0 %v476
    %793 = vmatprep.subr.bf16.mxu0 %v473
    %794 = vmatpush1.bf16.msra.mxu0 %v472
    %795 = vmatprep.subr.bf16.mxu0 %v469
    %796 = vmatpush1.bf16.msra.mxu0 %v468
    %797 = vmatprep.subr.bf16.mxu0 %v465
    %798 = vmatpush1.bf16.msra.mxu0 %v464
    %799 = vmatprep.subr.bf16.mxu0 %v525
    %800 = vmatpush2.bf16.msra.mxu0 %v524
    %801 = vmatprep.subr.bf16.mxu0 %v521
    %802 = vmatpush2.bf16.msra.mxu0 %v520
    %803 = vmatprep.subr.bf16.mxu0 %v517
    %804 = vmatpush2.bf16.msra.mxu0 %v516
    %805 = vmatprep.subr.bf16.mxu0 %v513
    %806 = vmatpush2.bf16.msra.mxu0 %v512
    %807 = vmatprep.subr.bf16.mxu0 %v509
    %808 = vmatpush2.bf16.msra.mxu0 %v508
    %809 = vmatprep.subr.bf16.mxu0 %v505
    %810 = vmatpush2.bf16.msra.mxu0 %v504
    %811 = vmatprep.subr.bf16.mxu0 %v501
    %812 = vmatpush2.bf16.msra.mxu0 %v500
    %813 = vmatprep.subr.bf16.mxu0 %v497
    %814 = vmatpush2.bf16.msra.mxu0 %v496
    %815 = vmatprep.mubr.bf16.mxu0 %v153
    %816 = vmatmul.mubr.bf16.gmra.mxu0 %v152
    %v817 = vpop.f32.mrf.mxu0
    %v818 = vadd.f32 %v261, %v817
    %v819 = vpop.f32.mrf.mxu0
    %v820 = vadd.f32 %v265, %v819
    %v821 = vpop.f32.mrf.mxu0
    %v822 = vadd.f32 %v261, %v821
    %v823 = vpop.f32.mrf.mxu0
    %v824 = vadd.f32 %v265, %v823
    %825 = vmatprep.mubr.bf16.mxu0 %v155
    %826 = vmatmul.mubr.bf16.gmra.mxu0 %v154
    %v827 = vpop.f32.mrf.mxu0
    %v828 = vadd.f32 %v261, %v827
    %v829 = vpop.f32.mrf.mxu0
    %v830 = vadd.f32 %v265, %v829
    %v831 = vpop.f32.mrf.mxu0
    %v832 = vadd.f32 %v261, %v831
    %v833 = vpop.f32.mrf.mxu0
    %v834 = vadd.f32 %v265, %v833
    %835 = vmatprep.mubr.bf16.mxu0 %v157
    %836 = vmatmul.mubr.bf16.gmra.mxu0 %v156
    %v837 = vpop.f32.mrf.mxu0
    %v838 = vadd.f32 %v261, %v837
    %v839 = vpop.f32.mrf.mxu0
    %v840 = vadd.f32 %v265, %v839
    %v841 = vpop.f32.mrf.mxu0
    %v842 = vadd.f32 %v261, %v841
    %v843 = vpop.f32.mrf.mxu0
    %v844 = vadd.f32 %v265, %v843
    %845 = vmatprep.mubr.bf16.mxu0 %v159
    %846 = vmatmul.mubr.bf16.gmra.mxu0 %v158
    %v847 = vpop.f32.mrf.mxu0
    %v848 = vadd.f32 %v261, %v847
    %v849 = vpop.f32.mrf.mxu0
    %v850 = vadd.f32 %v265, %v849
    %v851 = vpop.f32.mrf.mxu0
    %v852 = vadd.f32 %v261, %v851
    %v853 = vpop.f32.mrf.mxu0
    %v854 = vadd.f32 %v265, %v853
    %855 = vmatprep.mubr.bf16.mxu0 %v161
    %856 = vmatmul.mubr.bf16.gmra.mxu0 %v160
    %v857 = vpop.f32.mrf.mxu0
    %v858 = vadd.f32 %v261, %v857
    %v859 = vpop.f32.mrf.mxu0
    %v860 = vadd.f32 %v265, %v859
    %v861 = vpop.f32.mrf.mxu0
    %v862 = vadd.f32 %v261, %v861
    %v863 = vpop.f32.mrf.mxu0
    %v864 = vadd.f32 %v265, %v863
    %865 = vmatprep.mubr.bf16.mxu0 %v163
    %866 = vmatmul.mubr.bf16.gmra.mxu0 %v162
    %v867 = vpop.f32.mrf.mxu0
    %v868 = vadd.f32 %v261, %v867
    %v869 = vpop.f32.mrf.mxu0
    %v870 = vadd.f32 %v265, %v869
    %v871 = vpop.f32.mrf.mxu0
    %v872 = vadd.f32 %v261, %v871
    %v873 = vpop.f32.mrf.mxu0
    %v874 = vadd.f32 %v265, %v873
    %875 = vmatprep.mubr.bf16.mxu0 %v165
    %876 = vmatmul.mubr.bf16.gmra.mxu0 %v164
    %v877 = vpop.f32.mrf.mxu0
    %v878 = vadd.f32 %v261, %v877
    %v879 = vpop.f32.mrf.mxu0
    %v880 = vadd.f32 %v265, %v879
    %v881 = vpop.f32.mrf.mxu0
    %v882 = vadd.f32 %v261, %v881
    %v883 = vpop.f32.mrf.mxu0
    %v884 = vadd.f32 %v265, %v883
    %885 = vmatprep.mubr.bf16.mxu0 %v167
    %886 = vmatmul.mubr.bf16.gmra.mxu0 %v166
    %v887 = vpop.f32.mrf.mxu0
    %v888 = vadd.f32 %v261, %v887
    %v889 = vpop.f32.mrf.mxu0
    %v890 = vadd.f32 %v265, %v889
    %v891 = vpop.f32.mrf.mxu0
    %v892 = vadd.f32 %v261, %v891
    %v893 = vpop.f32.mrf.mxu0
    %v894 = vadd.f32 %v265, %v893
    %895 = vmatprep.mubr.bf16.mxu0 %v169
    %896 = vmatmul.mubr.bf16.gmra.mxu0 %v168
    %v897 = vpop.f32.mrf.mxu0
    %v898 = vadd.f32 %v261, %v897
    %v899 = vpop.f32.mrf.mxu0
    %v900 = vadd.f32 %v265, %v899
    %v901 = vpop.f32.mrf.mxu0
    %v902 = vadd.f32 %v261, %v901
    %v903 = vpop.f32.mrf.mxu0
    %v904 = vadd.f32 %v265, %v903
    %905 = vmatprep.mubr.bf16.mxu0 %v171
    %906 = vmatmul.mubr.bf16.gmra.mxu0 %v170
    %v907 = vpop.f32.mrf.mxu0
    %v908 = vadd.f32 %v261, %v907
    %v909 = vpop.f32.mrf.mxu0
    %v910 = vadd.f32 %v265, %v909
    %v911 = vpop.f32.mrf.mxu0
    %v912 = vadd.f32 %v261, %v911
    %v913 = vpop.f32.mrf.mxu0
    %v914 = vadd.f32 %v265, %v913
    %915 = vmatprep.mubr.bf16.mxu0 %v173
    %916 = vmatmul.mubr.bf16.gmra.mxu0 %v172
    %v917 = vpop.f32.mrf.mxu0
    %v918 = vadd.f32 %v261, %v917
    %v919 = vpop.f32.mrf.mxu0
    %v920 = vadd.f32 %v265, %v919
    %v921 = vpop.f32.mrf.mxu0
    %v922 = vadd.f32 %v261, %v921
    %v923 = vpop.f32.mrf.mxu0
    %v924 = vadd.f32 %v265, %v923
    %925 = vmatprep.mubr.bf16.mxu0 %v175
    %926 = vmatmul.mubr.bf16.gmra.mxu0 %v174
    %v927 = vpop.f32.mrf.mxu0
    %v928 = vadd.f32 %v261, %v927
    %v929 = vpop.f32.mrf.mxu0
    %v930 = vadd.f32 %v265, %v929
    %v931 = vpop.f32.mrf.mxu0
    %v932 = vadd.f32 %v261, %v931
    %v933 = vpop.f32.mrf.mxu0
    %v934 = vadd.f32 %v265, %v933
    %935 = vmatprep.mubr.bf16.mxu0 %v177
    %936 = vmatmul.mubr.bf16.gmra.mxu0 %v176
    %v937 = vpop.f32.mrf.mxu0
    %v938 = vadd.f32 %v261, %v937
    %v939 = vpop.f32.mrf.mxu0
    %v940 = vadd.f32 %v265, %v939
    %v941 = vpop.f32.mrf.mxu0
    %v942 = vadd.f32 %v261, %v941
    %v943 = vpop.f32.mrf.mxu0
    %v944 = vadd.f32 %v265, %v943
    %945 = vmatprep.mubr.bf16.mxu0 %v179
    %946 = vmatmul.mubr.bf16.gmra.mxu0 %v178
    %v947 = vpop.f32.mrf.mxu0
    %v948 = vadd.f32 %v261, %v947
    %v949 = vpop.f32.mrf.mxu0
    %v950 = vadd.f32 %v265, %v949
    %v951 = vpop.f32.mrf.mxu0
    %v952 = vadd.f32 %v261, %v951
    %v953 = vpop.f32.mrf.mxu0
    %v954 = vadd.f32 %v265, %v953
    %955 = vmatprep.mubr.bf16.mxu0 %v181
    %956 = vmatmul.mubr.bf16.gmra.mxu0 %v180
    %v957 = vpop.f32.mrf.mxu0
    %v958 = vadd.f32 %v261, %v957
    %v959 = vpop.f32.mrf.mxu0
    %v960 = vadd.f32 %v265, %v959
    %v961 = vpop.f32.mrf.mxu0
    %v962 = vadd.f32 %v261, %v961
    %v963 = vpop.f32.mrf.mxu0
    %v964 = vadd.f32 %v265, %v963
    %965 = vmatprep.mubr.bf16.mxu0 %v183
    %966 = vmatmul.mubr.bf16.gmra.mxu0 %v182
    %v967 = vpop.f32.mrf.mxu0
    %v968 = vadd.f32 %v261, %v967
    %v969 = vpop.f32.mrf.mxu0
    %v970 = vadd.f32 %v265, %v969
    %v971 = vpop.f32.mrf.mxu0
    %v972 = vadd.f32 %v261, %v971
    %v973 = vpop.f32.mrf.mxu0
    %v974 = vadd.f32 %v265, %v973
    %975 = vdwg.mxu0
    %v976 = vmax.f32 %v625, 0.0
    %v977 = vmax.f32 %v627, 0.0
    %v978 = vmax.f32 %v818, 0.0
    %v979 = vmax.f32 %v820, 0.0
    %v980 = vmax.f32 %v629, 0.0
    %v981 = vmax.f32 %v631, 0.0
    %v982 = vmax.f32 %v822, 0.0
    %v983 = vmax.f32 %v824, 0.0
    %v984 = vmax.f32 %v635, 0.0
    %v985 = vmax.f32 %v637, 0.0
    %v986 = vmax.f32 %v828, 0.0
    %v987 = vmax.f32 %v830, 0.0
    %v988 = vmax.f32 %v639, 0.0
    %v989 = vmax.f32 %v641, 0.0
    %v990 = vmax.f32 %v832, 0.0
    %v991 = vmax.f32 %v834, 0.0
    %v992 = vmax.f32 %v645, 0.0
    %v993 = vmax.f32 %v647, 0.0
    %v994 = vmax.f32 %v838, 0.0
    %v995 = vmax.f32 %v840, 0.0
    %v996 = vmax.f32 %v649, 0.0
    %v997 = vmax.f32 %v651, 0.0
    %v998 = vmax.f32 %v842, 0.0
    %v999 = vmax.f32 %v844, 0.0
    %v1000 = vmax.f32 %v655, 0.0
    %v1001 = vmax.f32 %v657, 0.0
    %v1002 = vmax.f32 %v848, 0.0
    %v1003 = vmax.f32 %v850, 0.0
    %v1004 = vmax.f32 %v659, 0.0
    %v1005 = vmax.f32 %v661, 0.0
    %v1006 = vmax.f32 %v852, 0.0
    %v1007 = vmax.f32 %v854, 0.0
    %v1008 = vmax.f32 %v665, 0.0
    %v1009 = vmax.f32 %v667, 0.0
    %v1010 = vmax.f32 %v858, 0.0
    %v1011 = vmax.f32 %v860, 0.0
    %v1012 = vmax.f32 %v669, 0.0
    %v1013 = vmax.f32 %v671, 0.0
    %v1014 = vmax.f32 %v862, 0.0
    %v1015 = vmax.f32 %v864, 0.0
    %v1016 = vmax.f32 %v675, 0.0
    %v1017 = vmax.f32 %v677, 0.0
    %v1018 = vmax.f32 %v868, 0.0
    %v1019 = vmax.f32 %v870, 0.0
    %v1020 = vmax.f32 %v679, 0.0
    %v1021 = vmax.f32 %v681, 0.0
    %v1022 = vmax.f32 %v872, 0.0
    %v1023 = vmax.f32 %v874, 0.0
    %v1024 = vmax.f32 %v685, 0.0
    %v1025 = vmax.f32 %v687, 0.0
    %v1026 = vmax.f32 %v878, 0.0
    %v1027 = vmax.f32 %v880, 0.0
    %v1028 = vmax.f32 %v689, 0.0
    %v1029 = vmax.f32 %v691, 0.0
    %v1030 = vmax.f32 %v882, 0.0
    %v1031 = vmax.f32 %v884, 0.0
    %v1032 = vmax.f32 %v695, 0.0
    %v1033 = vmax.f32 %v697, 0.0
    %v1034 = vmax.f32 %v888, 0.0
    %v1035 = vmax.f32 %v890, 0.0
    %v1036 = vmax.f32 %v699, 0.0
    %v1037 = vmax.f32 %v701, 0.0
    %v1038 = vmax.f32 %v892, 0.0
    %v1039 = vmax.f32 %v894, 0.0
    %v1040 = vmax.f32 %v705, 0.0
    %v1041 = vmax.f32 %v707, 0.0
    %v1042 = vmax.f32 %v898, 0.0
    %v1043 = vmax.f32 %v900, 0.0
    %v1044 = vmax.f32 %v709, 0.0
    %v1045 = vmax.f32 %v711, 0.0
    %v1046 = vmax.f32 %v902, 0.0
    %v1047 = vmax.f32 %v904, 0.0
    %v1048 = vmax.f32 %v715, 0.0
    %v1049 = vmax.f32 %v717, 0.0
    %v1050 = vmax.f32 %v908, 0.0
    %v1051 = vmax.f32 %v910, 0.0
    %v1052 = vmax.f32 %v719, 0.0
    %v1053 = vmax.f32 %v721, 0.0
    %v1054 = vmax.f32 %v912, 0.0
    %v1055 = vmax.f32 %v914, 0.0
    %v1056 = vmax.f32 %v725, 0.0
    %v1057 = vmax.f32 %v727, 0.0
    %v1058 = vmax.f32 %v918, 0.0
    %v1059 = vmax.f32 %v920, 0.0
    %v1060 = vmax.f32 %v729, 0.0
    %v1061 = vmax.f32 %v731, 0.0
    %v1062 = vmax.f32 %v922, 0.0
    %v1063 = vmax.f32 %v924, 0.0
    %v1064 = vmax.f32 %v735, 0.0
    %v1065 = vmax.f32 %v737, 0.0
    %v1066 = vmax.f32 %v928, 0.0
    %v1067 = vmax.f32 %v930, 0.0
    %v1068 = vmax.f32 %v739, 0.0
    %v1069 = vmax.f32 %v741, 0.0
    %v1070 = vmax.f32 %v932, 0.0
    %v1071 = vmax.f32 %v934, 0.0
    %v1072 = vmax.f32 %v745, 0.0
    %v1073 = vmax.f32 %v747, 0.0
    %v1074 = vmax.f32 %v938, 0.0
    %v1075 = vmax.f32 %v940, 0.0
    %v1076 = vmax.f32 %v749, 0.0
    %v1077 = vmax.f32 %v751, 0.0
    %v1078 = vmax.f32 %v942, 0.0
    %v1079 = vmax.f32 %v944, 0.0
    %v1080 = vmax.f32 %v755, 0.0
    %v1081 = vmax.f32 %v757, 0.0
    %v1082 = vmax.f32 %v948, 0.0
    %v1083 = vmax.f32 %v950, 0.0
    %v1084 = vmax.f32 %v759, 0.0
    %v1085 = vmax.f32 %v761, 0.0
    %v1086 = vmax.f32 %v952, 0.0
    %v1087 = vmax.f32 %v954, 0.0
    %v1088 = vmax.f32 %v765, 0.0
    %v1089 = vmax.f32 %v767, 0.0
    %v1090 = vmax.f32 %v958, 0.0
    %v1091 = vmax.f32 %v960, 0.0
    %v1092 = vmax.f32 %v769, 0.0
    %v1093 = vmax.f32 %v771, 0.0
    %v1094 = vmax.f32 %v962, 0.0
    %v1095 = vmax.f32 %v964, 0.0
    %v1096 = vmax.f32 %v775, 0.0
    %v1097 = vmax.f32 %v777, 0.0
    %v1098 = vmax.f32 %v968, 0.0
    %v1099 = vmax.f32 %v970, 0.0
    %v1100 = vmax.f32 %v779, 0.0
    %v1101 = vmax.f32 %v781, 0.0
    %v1102 = vmax.f32 %v972, 0.0
    %v1103 = vmax.f32 %v974, 0.0
    %v1104 = vpack.c.bf16 %v980, %v976
    %v1105 = vpack.c.bf16 %v981, %v977
    %v1106 = vpack.c.bf16 %v982, %v978
    %v1107 = vpack.c.bf16 %v983, %v979
    %v1108 = vpack.c.bf16 %v988, %v984
    %v1109 = vpack.c.bf16 %v989, %v985
    %v1110 = vpack.c.bf16 %v990, %v986
    %v1111 = vpack.c.bf16 %v991, %v987
    %v1112 = vpack.c.bf16 %v996, %v992
    %v1113 = vpack.c.bf16 %v997, %v993
    %v1114 = vpack.c.bf16 %v998, %v994
    %v1115 = vpack.c.bf16 %v999, %v995
    %v1116 = vpack.c.bf16 %v1004, %v1000
    %v1117 = vpack.c.bf16 %v1005, %v1001
    %v1118 = vpack.c.bf16 %v1006, %v1002
    %v1119 = vpack.c.bf16 %v1007, %v1003
    %v1120 = vpack.c.bf16 %v1012, %v1008
    %v1121 = vpack.c.bf16 %v1013, %v1009
    %v1122 = vpack.c.bf16 %v1014, %v1010
    %v1123 = vpack.c.bf16 %v1015, %v1011
    %v1124 = vpack.c.bf16 %v1020, %v1016
    %v1125 = vpack.c.bf16 %v1021, %v1017
    %v1126 = vpack.c.bf16 %v1022, %v1018
    %v1127 = vpack.c.bf16 %v1023, %v1019
    %v1128 = vpack.c.bf16 %v1028, %v1024
    %v1129 = vpack.c.bf16 %v1029, %v1025
    %v1130 = vpack.c.bf16 %v1030, %v1026
    %v1131 = vpack.c.bf16 %v1031, %v1027
    %v1132 = vpack.c.bf16 %v1036, %v1032
    %v1133 = vpack.c.bf16 %v1037, %v1033
    %v1134 = vpack.c.bf16 %v1038, %v1034
    %v1135 = vpack.c.bf16 %v1039, %v1035
    %v1136 = vpack.c.bf16 %v1044, %v1040
    %v1137 = vpack.c.bf16 %v1045, %v1041
    %v1138 = vpack.c.bf16 %v1046, %v1042
    %v1139 = vpack.c.bf16 %v1047, %v1043
    %v1140 = vpack.c.bf16 %v1052, %v1048
    %v1141 = vpack.c.bf16 %v1053, %v1049
    %v1142 = vpack.c.bf16 %v1054, %v1050
    %v1143 = vpack.c.bf16 %v1055, %v1051
    %v1144 = vpack.c.bf16 %v1060, %v1056
    %v1145 = vpack.c.bf16 %v1061, %v1057
    %v1146 = vpack.c.bf16 %v1062, %v1058
    %v1147 = vpack.c.bf16 %v1063, %v1059
    %v1148 = vpack.c.bf16 %v1068, %v1064
    %v1149 = vpack.c.bf16 %v1069, %v1065
    %v1150 = vpack.c.bf16 %v1070, %v1066
    %v1151 = vpack.c.bf16 %v1071, %v1067
    %v1152 = vpack.c.bf16 %v1076, %v1072
    %v1153 = vpack.c.bf16 %v1077, %v1073
    %v1154 = vpack.c.bf16 %v1078, %v1074
    %v1155 = vpack.c.bf16 %v1079, %v1075
    %v1156 = vpack.c.bf16 %v1084, %v1080
    %v1157 = vpack.c.bf16 %v1085, %v1081
    %v1158 = vpack.c.bf16 %v1086, %v1082
    %v1159 = vpack.c.bf16 %v1087, %v1083
    %v1160 = vpack.c.bf16 %v1092, %v1088
    %v1161 = vpack.c.bf16 %v1093, %v1089
    %v1162 = vpack.c.bf16 %v1094, %v1090
    %v1163 = vpack.c.bf16 %v1095, %v1091
    %v1164 = vpack.c.bf16 %v1100, %v1096
    %v1165 = vpack.c.bf16 %v1101, %v1097
    %v1166 = vpack.c.bf16 %v1102, %v1098
    %v1167 = vpack.c.bf16 %v1103, %v1099
    %v1168 = vld [vmem:[#allocation7] sm:$0xf]
    %v1169 = vld [vmem:[#allocation7 + $0x4] sm:$0xf]
    %v1170 = vld [vmem:[#allocation7 + $0x8] sm:$0xf]
    %v1171 = vld [vmem:[#allocation7 + $0xc] sm:$0xf]
    %v1172 = vld [vmem:[#allocation7 + $0x10] sm:$0xf]
    %v1173 = vld [vmem:[#allocation7 + $0x14] sm:$0xf]
    %v1174 = vld [vmem:[#allocation7 + $0x18] sm:$0xf]
    %v1175 = vld [vmem:[#allocation7 + $0x1c] sm:$0xf]
    %v1176 = vld [vmem:[#allocation7 + $0x20] sm:$0xf]
    %v1177 = vld [vmem:[#allocation7 + $0x24] sm:$0xf]
    %v1178 = vld [vmem:[#allocation7 + $0x28] sm:$0xf]
    %v1179 = vld [vmem:[#allocation7 + $0x2c] sm:$0xf]
    %v1180 = vld [vmem:[#allocation7 + $0x30] sm:$0xf]
    %v1181 = vld [vmem:[#allocation7 + $0x34] sm:$0xf]
    %v1182 = vld [vmem:[#allocation7 + $0x38] sm:$0xf]
    %v1183 = vld [vmem:[#allocation7 + $0x3c] sm:$0xf]
    %v1184 = vld [vmem:[#allocation7 + $0x40] sm:$0xf]
    %v1185 = vld [vmem:[#allocation7 + $0x44] sm:$0xf]
    %v1186 = vld [vmem:[#allocation7 + $0x48] sm:$0xf]
    %v1187 = vld [vmem:[#allocation7 + $0x4c] sm:$0xf]
    %v1188 = vld [vmem:[#allocation7 + $0x50] sm:$0xf]
    %v1189 = vld [vmem:[#allocation7 + $0x54] sm:$0xf]
    %v1190 = vld [vmem:[#allocation7 + $0x58] sm:$0xf]
    %v1191 = vld [vmem:[#allocation7 + $0x5c] sm:$0xf]
    %v1192 = vld [vmem:[#allocation7 + $0x60] sm:$0xf]
    %v1193 = vld [vmem:[#allocation7 + $0x64] sm:$0xf]
    %v1194 = vld [vmem:[#allocation7 + $0x68] sm:$0xf]
    %v1195 = vld [vmem:[#allocation7 + $0x6c] sm:$0xf]
    %v1196 = vld [vmem:[#allocation7 + $0x70] sm:$0xf]
    %v1197 = vld [vmem:[#allocation7 + $0x74] sm:$0xf]
    %v1198 = vld [vmem:[#allocation7 + $0x78] sm:$0xf]
    %v1199 = vld [vmem:[#allocation7 + $0x7c] sm:$0xf]
    %v1200 = vld [vmem:[#allocation7 + $0x80] sm:$0xf]
    %v1201 = vld [vmem:[#allocation7 + $0x84] sm:$0xf]
    %v1202 = vld [vmem:[#allocation7 + $0x88] sm:$0xf]
    %v1203 = vld [vmem:[#allocation7 + $0x8c] sm:$0xf]
    %v1204 = vld [vmem:[#allocation7 + $0x90] sm:$0xf]
    %v1205 = vld [vmem:[#allocation7 + $0x94] sm:$0xf]
    %v1206 = vld [vmem:[#allocation7 + $0x98] sm:$0xf]
    %v1207 = vld [vmem:[#allocation7 + $0x9c] sm:$0xf]
    %v1208 = vld [vmem:[#allocation7 + $0xa0] sm:$0xf]
    %v1209 = vld [vmem:[#allocation7 + $0xa4] sm:$0xf]
    %v1210 = vld [vmem:[#allocation7 + $0xa8] sm:$0xf]
    %v1211 = vld [vmem:[#allocation7 + $0xac] sm:$0xf]
    %v1212 = vld [vmem:[#allocation7 + $0xb0] sm:$0xf]
    %v1213 = vld [vmem:[#allocation7 + $0xb4] sm:$0xf]
    %v1214 = vld [vmem:[#allocation7 + $0xb8] sm:$0xf]
    %v1215 = vld [vmem:[#allocation7 + $0xbc] sm:$0xf]
    %v1216 = vld [vmem:[#allocation7 + $0xc0] sm:$0xf]
    %v1217 = vld [vmem:[#allocation7 + $0xc4] sm:$0xf]
    %v1218 = vld [vmem:[#allocation7 + $0xc8] sm:$0xf]
    %v1219 = vld [vmem:[#allocation7 + $0xcc] sm:$0xf]
    %v1220 = vld [vmem:[#allocation7 + $0xd0] sm:$0xf]
    %v1221 = vld [vmem:[#allocation7 + $0xd4] sm:$0xf]
    %v1222 = vld [vmem:[#allocation7 + $0xd8] sm:$0xf]
    %v1223 = vld [vmem:[#allocation7 + $0xdc] sm:$0xf]
    %v1224 = vld [vmem:[#allocation7 + $0xe0] sm:$0xf]
    %v1225 = vld [vmem:[#allocation7 + $0xe4] sm:$0xf]
    %v1226 = vld [vmem:[#allocation7 + $0xe8] sm:$0xf]
    %v1227 = vld [vmem:[#allocation7 + $0xec] sm:$0xf]
    %v1228 = vld [vmem:[#allocation7 + $0xf0] sm:$0xf]
    %v1229 = vld [vmem:[#allocation7 + $0xf4] sm:$0xf]
    %v1230 = vld [vmem:[#allocation7 + $0xf8] sm:$0xf]
    %v1231 = vld [vmem:[#allocation7 + $0xfc] sm:$0xf]
    %v1232 = vld [vmem:[#allocation10 + $0x4] sm:$0x1]
    %v1234 = vlaneseq
    %v1235 = vshrl.u32 %v1234, 7
    %v1236 = vsub.s32 0, %v1235
    %v1237 = vrot.slane %v1232, %v1236
    %v1303 = vunpack.c.l.b16 %v1168
    %v1304 = vunpack.c.l.b16 %v1169
    %v1305 = vunpack.c.l.b16 %v1170
    %v1306 = vunpack.c.l.b16 %v1171
    %v1307 = vunpack.c.l.b16 %v1172
    %v1308 = vunpack.c.l.b16 %v1173
    %v1309 = vunpack.c.l.b16 %v1174
    %v1310 = vunpack.c.l.b16 %v1175
    %v1311 = vunpack.c.l.b16 %v1176
    %v1312 = vunpack.c.l.b16 %v1177
    %v1313 = vunpack.c.l.b16 %v1178
    %v1314 = vunpack.c.l.b16 %v1179
    %v1315 = vunpack.c.l.b16 %v1180
    %v1316 = vunpack.c.l.b16 %v1181
    %v1317 = vunpack.c.l.b16 %v1182
    %v1318 = vunpack.c.l.b16 %v1183
    %v1319 = vunpack.c.l.b16 %v1184
    %v1320 = vunpack.c.l.b16 %v1185
    %v1321 = vunpack.c.l.b16 %v1186
    %v1322 = vunpack.c.l.b16 %v1187
    %v1323 = vunpack.c.l.b16 %v1188
    %v1324 = vunpack.c.l.b16 %v1189
    %v1325 = vunpack.c.l.b16 %v1190
    %v1326 = vunpack.c.l.b16 %v1191
    %v1327 = vunpack.c.l.b16 %v1192
    %v1328 = vunpack.c.l.b16 %v1193
    %v1329 = vunpack.c.l.b16 %v1194
    %v1330 = vunpack.c.l.b16 %v1195
    %v1331 = vunpack.c.l.b16 %v1196
    %v1332 = vunpack.c.l.b16 %v1197
    %v1333 = vunpack.c.l.b16 %v1198
    %v1334 = vunpack.c.l.b16 %v1199
    %v1335 = vunpack.c.l.b16 %v1200
    %v1336 = vunpack.c.l.b16 %v1201
    %v1337 = vunpack.c.l.b16 %v1202
    %v1338 = vunpack.c.l.b16 %v1203
    %v1339 = vunpack.c.l.b16 %v1204
    %v1340 = vunpack.c.l.b16 %v1205
    %v1341 = vunpack.c.l.b16 %v1206
    %v1342 = vunpack.c.l.b16 %v1207
    %v1343 = vunpack.c.l.b16 %v1208
    %v1344 = vunpack.c.l.b16 %v1209
    %v1345 = vunpack.c.l.b16 %v1210
    %v1346 = vunpack.c.l.b16 %v1211
    %v1347 = vunpack.c.l.b16 %v1212
    %v1348 = vunpack.c.l.b16 %v1213
    %v1349 = vunpack.c.l.b16 %v1214
    %v1350 = vunpack.c.l.b16 %v1215
    %v1351 = vunpack.c.l.b16 %v1216
    %v1352 = vunpack.c.l.b16 %v1217
    %v1353 = vunpack.c.l.b16 %v1218
    %v1354 = vunpack.c.l.b16 %v1219
    %v1355 = vunpack.c.l.b16 %v1220
    %v1356 = vunpack.c.l.b16 %v1221
    %v1357 = vunpack.c.l.b16 %v1222
    %v1358 = vunpack.c.l.b16 %v1223
    %v1359 = vunpack.c.l.b16 %v1224
    %v1360 = vunpack.c.l.b16 %v1225
    %v1361 = vunpack.c.l.b16 %v1226
    %v1362 = vunpack.c.l.b16 %v1227
    %v1363 = vunpack.c.l.b16 %v1228
    %v1364 = vunpack.c.l.b16 %v1229
    %v1365 = vunpack.c.l.b16 %v1230
    %v1366 = vunpack.c.l.b16 %v1231
    %v1367 = vpack.c.b16 %v1304, %v1303
    %v1368 = vpack.c.b16 %v1306, %v1305
    %v1369 = vpack.c.b16 %v1308, %v1307
    %v1370 = vpack.c.b16 %v1310, %v1309
    %v1371 = vpack.c.b16 %v1312, %v1311
    %v1372 = vpack.c.b16 %v1314, %v1313
    %v1373 = vpack.c.b16 %v1316, %v1315
    %v1374 = vpack.c.b16 %v1318, %v1317
    %v1375 = vpack.c.b16 %v1320, %v1319
    %v1376 = vpack.c.b16 %v1322, %v1321
    %v1377 = vpack.c.b16 %v1324, %v1323
    %v1378 = vpack.c.b16 %v1326, %v1325
    %v1379 = vpack.c.b16 %v1328, %v1327
    %v1380 = vpack.c.b16 %v1330, %v1329
    %v1381 = vpack.c.b16 %v1332, %v1331
    %v1382 = vpack.c.b16 %v1334, %v1333
    %v1383 = vpack.c.b16 %v1336, %v1335
    %v1384 = vpack.c.b16 %v1338, %v1337
    %v1385 = vpack.c.b16 %v1340, %v1339
    %v1386 = vpack.c.b16 %v1342, %v1341
    %v1387 = vpack.c.b16 %v1344, %v1343
    %v1388 = vpack.c.b16 %v1346, %v1345
    %v1389 = vpack.c.b16 %v1348, %v1347
    %v1390 = vpack.c.b16 %v1350, %v1349
    %v1391 = vpack.c.b16 %v1352, %v1351
    %v1392 = vpack.c.b16 %v1354, %v1353
    %v1393 = vpack.c.b16 %v1356, %v1355
    %v1394 = vpack.c.b16 %v1358, %v1357
    %v1395 = vpack.c.b16 %v1360, %v1359
    %v1396 = vpack.c.b16 %v1362, %v1361
    %v1397 = vpack.c.b16 %v1364, %v1363
    %v1398 = vpack.c.b16 %v1366, %v1365
    %1431 = vmatprep.subr.bf16.mxu0 0
    %1432 = vmatpush1.bf16.msra.mxu0 %v1374
    %1433 = vmatprep.subr.bf16.mxu0 0
    %1434 = vmatpush1.bf16.msra.mxu0 %v1373
    %1435 = vmatprep.subr.bf16.mxu0 0
    %1436 = vmatpush1.bf16.msra.mxu0 %v1372
    %1437 = vmatprep.subr.bf16.mxu0 0
    %1438 = vmatpush1.bf16.msra.mxu0 %v1371
    %1439 = vmatprep.subr.bf16.mxu0 0
    %1440 = vmatpush1.bf16.msra.mxu0 %v1370
    %1441 = vmatprep.subr.bf16.mxu0 0
    %1442 = vmatpush1.bf16.msra.mxu0 %v1369
    %1443 = vmatprep.subr.bf16.mxu0 0
    %1444 = vmatpush1.bf16.msra.mxu0 %v1368
    %1445 = vmatprep.subr.bf16.mxu0 0
    %1446 = vmatpush1.bf16.msra.mxu0 %v1367
    %1447 = vmatprep.subr.bf16.mxu0 0
    %1448 = vmatpush2.bf16.msra.mxu0 %v1382
    %1449 = vmatprep.subr.bf16.mxu0 0
    %1450 = vmatpush2.bf16.msra.mxu0 %v1381
    %1451 = vmatprep.subr.bf16.mxu0 0
    %1452 = vmatpush2.bf16.msra.mxu0 %v1380
    %1453 = vmatprep.subr.bf16.mxu0 0
    %1454 = vmatpush2.bf16.msra.mxu0 %v1379
    %1455 = vmatprep.subr.bf16.mxu0 0
    %1456 = vmatpush2.bf16.msra.mxu0 %v1378
    %1457 = vmatprep.subr.bf16.mxu0 0
    %1458 = vmatpush2.bf16.msra.mxu0 %v1377
    %1459 = vmatprep.subr.bf16.mxu0 0
    %1460 = vmatpush2.bf16.msra.mxu0 %v1376
    %1461 = vmatprep.subr.bf16.mxu0 0
    %1462 = vmatpush2.bf16.msra.mxu0 %v1375
    %1463 = vmatprep.mubr.bf16.mxu0 %v1105
    %1464 = vmatmul.mubr.bf16.gmra.mxu0 %v1104
    %v1465 = vpop.f32.mrf.mxu0
    %v1466 = vadd.f32 %v1237, %v1465
    %v1467 = vpop.f32.mrf.mxu0
    %v1468 = vpop.f32.mrf.mxu0
    %v1469 = vadd.f32 %v1237, %v1468
    %v1470 = vpop.f32.mrf.mxu0
    %1471 = vmatprep.mubr.bf16.mxu0 %v1109
    %1472 = vmatmul.mubr.bf16.gmra.mxu0 %v1108
    %v1473 = vpop.f32.mrf.mxu0
    %v1474 = vadd.f32 %v1237, %v1473
    %v1475 = vpop.f32.mrf.mxu0
    %v1476 = vpop.f32.mrf.mxu0
    %v1477 = vadd.f32 %v1237, %v1476
    %v1478 = vpop.f32.mrf.mxu0
    %1479 = vmatprep.mubr.bf16.mxu0 %v1113
    %1480 = vmatmul.mubr.bf16.gmra.mxu0 %v1112
    %v1481 = vpop.f32.mrf.mxu0
    %v1482 = vadd.f32 %v1237, %v1481
    %v1483 = vpop.f32.mrf.mxu0
    %v1484 = vpop.f32.mrf.mxu0
    %v1485 = vadd.f32 %v1237, %v1484
    %v1486 = vpop.f32.mrf.mxu0
    %1487 = vmatprep.mubr.bf16.mxu0 %v1117
    %1488 = vmatmul.mubr.bf16.gmra.mxu0 %v1116
    %v1489 = vpop.f32.mrf.mxu0
    %v1490 = vadd.f32 %v1237, %v1489
    %v1491 = vpop.f32.mrf.mxu0
    %v1492 = vpop.f32.mrf.mxu0
    %v1493 = vadd.f32 %v1237, %v1492
    %v1494 = vpop.f32.mrf.mxu0
    %1495 = vmatprep.mubr.bf16.mxu0 %v1121
    %1496 = vmatmul.mubr.bf16.gmra.mxu0 %v1120
    %v1497 = vpop.f32.mrf.mxu0
    %v1498 = vadd.f32 %v1237, %v1497
    %v1499 = vpop.f32.mrf.mxu0
    %v1500 = vpop.f32.mrf.mxu0
    %v1501 = vadd.f32 %v1237, %v1500
    %v1502 = vpop.f32.mrf.mxu0
    %1503 = vmatprep.mubr.bf16.mxu0 %v1125
    %1504 = vmatmul.mubr.bf16.gmra.mxu0 %v1124
    %v1505 = vpop.f32.mrf.mxu0
    %v1506 = vadd.f32 %v1237, %v1505
    %v1507 = vpop.f32.mrf.mxu0
    %v1508 = vpop.f32.mrf.mxu0
    %v1509 = vadd.f32 %v1237, %v1508
    %v1510 = vpop.f32.mrf.mxu0
    %1511 = vmatprep.mubr.bf16.mxu0 %v1129
    %1512 = vmatmul.mubr.bf16.gmra.mxu0 %v1128
    %v1513 = vpop.f32.mrf.mxu0
    %v1514 = vadd.f32 %v1237, %v1513
    %v1515 = vpop.f32.mrf.mxu0
    %v1516 = vpop.f32.mrf.mxu0
    %v1517 = vadd.f32 %v1237, %v1516
    %v1518 = vpop.f32.mrf.mxu0
    %1519 = vmatprep.mubr.bf16.mxu0 %v1133
    %1520 = vmatmul.mubr.bf16.gmra.mxu0 %v1132
    %v1521 = vpop.f32.mrf.mxu0
    %v1522 = vadd.f32 %v1237, %v1521
    %v1523 = vpop.f32.mrf.mxu0
    %v1524 = vpop.f32.mrf.mxu0
    %v1525 = vadd.f32 %v1237, %v1524
    %v1526 = vpop.f32.mrf.mxu0
    %1527 = vmatprep.mubr.bf16.mxu0 %v1137
    %1528 = vmatmul.mubr.bf16.gmra.mxu0 %v1136
    %v1529 = vpop.f32.mrf.mxu0
    %v1530 = vadd.f32 %v1237, %v1529
    %v1531 = vpop.f32.mrf.mxu0
    %v1532 = vpop.f32.mrf.mxu0
    %v1533 = vadd.f32 %v1237, %v1532
    %v1534 = vpop.f32.mrf.mxu0
    %1535 = vmatprep.mubr.bf16.mxu0 %v1141
    %1536 = vmatmul.mubr.bf16.gmra.mxu0 %v1140
    %v1537 = vpop.f32.mrf.mxu0
    %v1538 = vadd.f32 %v1237, %v1537
    %v1539 = vpop.f32.mrf.mxu0
    %v1540 = vpop.f32.mrf.mxu0
    %v1541 = vadd.f32 %v1237, %v1540
    %v1542 = vpop.f32.mrf.mxu0
    %1543 = vmatprep.mubr.bf16.mxu0 %v1145
    %1544 = vmatmul.mubr.bf16.gmra.mxu0 %v1144
    %v1545 = vpop.f32.mrf.mxu0
    %v1546 = vadd.f32 %v1237, %v1545
    %v1547 = vpop.f32.mrf.mxu0
    %v1548 = vpop.f32.mrf.mxu0
    %v1549 = vadd.f32 %v1237, %v1548
    %v1550 = vpop.f32.mrf.mxu0
    %1551 = vmatprep.mubr.bf16.mxu0 %v1149
    %1552 = vmatmul.mubr.bf16.gmra.mxu0 %v1148
    %v1553 = vpop.f32.mrf.mxu0
    %v1554 = vadd.f32 %v1237, %v1553
    %v1555 = vpop.f32.mrf.mxu0
    %v1556 = vpop.f32.mrf.mxu0
    %v1557 = vadd.f32 %v1237, %v1556
    %v1558 = vpop.f32.mrf.mxu0
    %1559 = vmatprep.mubr.bf16.mxu0 %v1153
    %1560 = vmatmul.mubr.bf16.gmra.mxu0 %v1152
    %v1561 = vpop.f32.mrf.mxu0
    %v1562 = vadd.f32 %v1237, %v1561
    %v1563 = vpop.f32.mrf.mxu0
    %v1564 = vpop.f32.mrf.mxu0
    %v1565 = vadd.f32 %v1237, %v1564
    %v1566 = vpop.f32.mrf.mxu0
    %1567 = vmatprep.mubr.bf16.mxu0 %v1157
    %1568 = vmatmul.mubr.bf16.gmra.mxu0 %v1156
    %v1569 = vpop.f32.mrf.mxu0
    %v1570 = vadd.f32 %v1237, %v1569
    %v1571 = vpop.f32.mrf.mxu0
    %v1572 = vpop.f32.mrf.mxu0
    %v1573 = vadd.f32 %v1237, %v1572
    %v1574 = vpop.f32.mrf.mxu0
    %1575 = vmatprep.mubr.bf16.mxu0 %v1161
    %1576 = vmatmul.mubr.bf16.gmra.mxu0 %v1160
    %v1577 = vpop.f32.mrf.mxu0
    %v1578 = vadd.f32 %v1237, %v1577
    %v1579 = vpop.f32.mrf.mxu0
    %v1580 = vpop.f32.mrf.mxu0
    %v1581 = vadd.f32 %v1237, %v1580
    %v1582 = vpop.f32.mrf.mxu0
    %1583 = vmatprep.mubr.bf16.mxu0 %v1165
    %1584 = vmatmul.mubr.bf16.gmra.mxu0 %v1164
    %v1585 = vpop.f32.mrf.mxu0
    %v1586 = vadd.f32 %v1237, %v1585
    %v1587 = vpop.f32.mrf.mxu0
    %v1588 = vpop.f32.mrf.mxu0
    %v1589 = vadd.f32 %v1237, %v1588
    %v1590 = vpop.f32.mrf.mxu0
    %1591 = vdwg.mxu0
    %1592 = vmatprep.subr.bf16.mxu0 0
    %1593 = vmatpush1.bf16.msra.mxu0 %v1390
    %1594 = vmatprep.subr.bf16.mxu0 0
    %1595 = vmatpush1.bf16.msra.mxu0 %v1389
    %1596 = vmatprep.subr.bf16.mxu0 0
    %1597 = vmatpush1.bf16.msra.mxu0 %v1388
    %1598 = vmatprep.subr.bf16.mxu0 0
    %1599 = vmatpush1.bf16.msra.mxu0 %v1387
    %1600 = vmatprep.subr.bf16.mxu0 0
    %1601 = vmatpush1.bf16.msra.mxu0 %v1386
    %1602 = vmatprep.subr.bf16.mxu0 0
    %1603 = vmatpush1.bf16.msra.mxu0 %v1385
    %1604 = vmatprep.subr.bf16.mxu0 0
    %1605 = vmatpush1.bf16.msra.mxu0 %v1384
    %1606 = vmatprep.subr.bf16.mxu0 0
    %1607 = vmatpush1.bf16.msra.mxu0 %v1383
    %1608 = vmatprep.subr.bf16.mxu0 0
    %1609 = vmatpush2.bf16.msra.mxu0 %v1398
    %1610 = vmatprep.subr.bf16.mxu0 0
    %1611 = vmatpush2.bf16.msra.mxu0 %v1397
    %1612 = vmatprep.subr.bf16.mxu0 0
    %1613 = vmatpush2.bf16.msra.mxu0 %v1396
    %1614 = vmatprep.subr.bf16.mxu0 0
    %1615 = vmatpush2.bf16.msra.mxu0 %v1395
    %1616 = vmatprep.subr.bf16.mxu0 0
    %1617 = vmatpush2.bf16.msra.mxu0 %v1394
    %1618 = vmatprep.subr.bf16.mxu0 0
    %1619 = vmatpush2.bf16.msra.mxu0 %v1393
    %1620 = vmatprep.subr.bf16.mxu0 0
    %1621 = vmatpush2.bf16.msra.mxu0 %v1392
    %1622 = vmatprep.subr.bf16.mxu0 0
    %1623 = vmatpush2.bf16.msra.mxu0 %v1391
    %1624 = vmatprep.mubr.bf16.mxu0 %v1107
    %1625 = vmatmul.mubr.bf16.gmra.mxu0 %v1106
    %v1626 = vpop.f32.mrf.mxu0
    %v1627 = vadd.f32 %v1466, %v1626
    %v1628 = vpop.f32.mrf.mxu0
    %v1629 = vpop.f32.mrf.mxu0
    %v1630 = vadd.f32 %v1469, %v1629
    %v1631 = vpop.f32.mrf.mxu0
    %1632 = vmatprep.mubr.bf16.mxu0 %v1111
    %1633 = vmatmul.mubr.bf16.gmra.mxu0 %v1110
    %v1634 = vpop.f32.mrf.mxu0
    %v1635 = vadd.f32 %v1474, %v1634
    %v1636 = vpop.f32.mrf.mxu0
    %v1637 = vpop.f32.mrf.mxu0
    %v1638 = vadd.f32 %v1477, %v1637
    %v1639 = vpop.f32.mrf.mxu0
    %1640 = vmatprep.mubr.bf16.mxu0 %v1115
    %1641 = vmatmul.mubr.bf16.gmra.mxu0 %v1114
    %v1642 = vpop.f32.mrf.mxu0
    %v1643 = vadd.f32 %v1482, %v1642
    %v1644 = vpop.f32.mrf.mxu0
    %v1645 = vpop.f32.mrf.mxu0
    %v1646 = vadd.f32 %v1485, %v1645
    %v1647 = vpop.f32.mrf.mxu0
    %1648 = vmatprep.mubr.bf16.mxu0 %v1119
    %1649 = vmatmul.mubr.bf16.gmra.mxu0 %v1118
    %v1650 = vpop.f32.mrf.mxu0
    %v1651 = vadd.f32 %v1490, %v1650
    %v1652 = vpop.f32.mrf.mxu0
    %v1653 = vpop.f32.mrf.mxu0
    %v1654 = vadd.f32 %v1493, %v1653
    %v1655 = vpop.f32.mrf.mxu0
    %1656 = vmatprep.mubr.bf16.mxu0 %v1123
    %1657 = vmatmul.mubr.bf16.gmra.mxu0 %v1122
    %v1658 = vpop.f32.mrf.mxu0
    %v1659 = vadd.f32 %v1498, %v1658
    %v1660 = vpop.f32.mrf.mxu0
    %v1661 = vpop.f32.mrf.mxu0
    %v1662 = vadd.f32 %v1501, %v1661
    %v1663 = vpop.f32.mrf.mxu0
    %1664 = vmatprep.mubr.bf16.mxu0 %v1127
    %1665 = vmatmul.mubr.bf16.gmra.mxu0 %v1126
    %v1666 = vpop.f32.mrf.mxu0
    %v1667 = vadd.f32 %v1506, %v1666
    %v1668 = vpop.f32.mrf.mxu0
    %v1669 = vpop.f32.mrf.mxu0
    %v1670 = vadd.f32 %v1509, %v1669
    %v1671 = vpop.f32.mrf.mxu0
    %1672 = vmatprep.mubr.bf16.mxu0 %v1131
    %1673 = vmatmul.mubr.bf16.gmra.mxu0 %v1130
    %v1674 = vpop.f32.mrf.mxu0
    %v1675 = vadd.f32 %v1514, %v1674
    %v1676 = vpop.f32.mrf.mxu0
    %v1677 = vpop.f32.mrf.mxu0
    %v1678 = vadd.f32 %v1517, %v1677
    %v1679 = vpop.f32.mrf.mxu0
    %1680 = vmatprep.mubr.bf16.mxu0 %v1135
    %1681 = vmatmul.mubr.bf16.gmra.mxu0 %v1134
    %v1682 = vpop.f32.mrf.mxu0
    %v1683 = vadd.f32 %v1522, %v1682
    %v1684 = vpop.f32.mrf.mxu0
    %v1685 = vpop.f32.mrf.mxu0
    %v1686 = vadd.f32 %v1525, %v1685
    %v1687 = vpop.f32.mrf.mxu0
    %1688 = vmatprep.mubr.bf16.mxu0 %v1139
    %1689 = vmatmul.mubr.bf16.gmra.mxu0 %v1138
    %v1690 = vpop.f32.mrf.mxu0
    %v1691 = vadd.f32 %v1530, %v1690
    %v1692 = vpop.f32.mrf.mxu0
    %v1693 = vpop.f32.mrf.mxu0
    %v1694 = vadd.f32 %v1533, %v1693
    %v1695 = vpop.f32.mrf.mxu0
    %1696 = vmatprep.mubr.bf16.mxu0 %v1143
    %1697 = vmatmul.mubr.bf16.gmra.mxu0 %v1142
    %v1698 = vpop.f32.mrf.mxu0
    %v1699 = vadd.f32 %v1538, %v1698
    %v1700 = vpop.f32.mrf.mxu0
    %v1701 = vpop.f32.mrf.mxu0
    %v1702 = vadd.f32 %v1541, %v1701
    %v1703 = vpop.f32.mrf.mxu0
    %1704 = vmatprep.mubr.bf16.mxu0 %v1147
    %1705 = vmatmul.mubr.bf16.gmra.mxu0 %v1146
    %v1706 = vpop.f32.mrf.mxu0
    %v1707 = vadd.f32 %v1546, %v1706
    %v1708 = vpop.f32.mrf.mxu0
    %v1709 = vpop.f32.mrf.mxu0
    %v1710 = vadd.f32 %v1549, %v1709
    %v1711 = vpop.f32.mrf.mxu0
    %1712 = vmatprep.mubr.bf16.mxu0 %v1151
    %1713 = vmatmul.mubr.bf16.gmra.mxu0 %v1150
    %v1714 = vpop.f32.mrf.mxu0
    %v1715 = vadd.f32 %v1554, %v1714
    %v1716 = vpop.f32.mrf.mxu0
    %v1717 = vpop.f32.mrf.mxu0
    %v1718 = vadd.f32 %v1557, %v1717
    %v1719 = vpop.f32.mrf.mxu0
    %1720 = vmatprep.mubr.bf16.mxu0 %v1155
    %1721 = vmatmul.mubr.bf16.gmra.mxu0 %v1154
    %v1722 = vpop.f32.mrf.mxu0
    %v1723 = vadd.f32 %v1562, %v1722
    %v1724 = vpop.f32.mrf.mxu0
    %v1725 = vpop.f32.mrf.mxu0
    %v1726 = vadd.f32 %v1565, %v1725
    %v1727 = vpop.f32.mrf.mxu0
    %1728 = vmatprep.mubr.bf16.mxu0 %v1159
    %1729 = vmatmul.mubr.bf16.gmra.mxu0 %v1158
    %v1730 = vpop.f32.mrf.mxu0
    %v1731 = vadd.f32 %v1570, %v1730
    %v1732 = vpop.f32.mrf.mxu0
    %v1733 = vpop.f32.mrf.mxu0
    %v1734 = vadd.f32 %v1573, %v1733
    %v1735 = vpop.f32.mrf.mxu0
    %1736 = vmatprep.mubr.bf16.mxu0 %v1163
    %1737 = vmatmul.mubr.bf16.gmra.mxu0 %v1162
    %v1738 = vpop.f32.mrf.mxu0
    %v1739 = vadd.f32 %v1578, %v1738
    %v1740 = vpop.f32.mrf.mxu0
    %v1741 = vpop.f32.mrf.mxu0
    %v1742 = vadd.f32 %v1581, %v1741
    %v1743 = vpop.f32.mrf.mxu0
    %1744 = vmatprep.mubr.bf16.mxu0 %v1167
    %1745 = vmatmul.mubr.bf16.gmra.mxu0 %v1166
    %v1746 = vpop.f32.mrf.mxu0
    %v1747 = vadd.f32 %v1586, %v1746
    %v1748 = vpop.f32.mrf.mxu0
    %v1749 = vpop.f32.mrf.mxu0
    %v1750 = vadd.f32 %v1589, %v1749
    %v1751 = vpop.f32.mrf.mxu0
    %1752 = vdwg.mxu0
    %v1753 = vmax.f32 %v1627, 0.0
    %v1754 = vmax.f32 %v1630, 0.0
    %v1755 = vmax.f32 %v1635, 0.0
    %v1756 = vmax.f32 %v1638, 0.0
    %v1757 = vmax.f32 %v1643, 0.0
    %v1758 = vmax.f32 %v1646, 0.0
    %v1759 = vmax.f32 %v1651, 0.0
    %v1760 = vmax.f32 %v1654, 0.0
    %v1761 = vmax.f32 %v1659, 0.0
    %v1762 = vmax.f32 %v1662, 0.0
    %v1763 = vmax.f32 %v1667, 0.0
    %v1764 = vmax.f32 %v1670, 0.0
    %v1765 = vmax.f32 %v1675, 0.0
    %v1766 = vmax.f32 %v1678, 0.0
    %v1767 = vmax.f32 %v1683, 0.0
    %v1768 = vmax.f32 %v1686, 0.0
    %v1769 = vmax.f32 %v1691, 0.0
    %v1770 = vmax.f32 %v1694, 0.0
    %v1771 = vmax.f32 %v1699, 0.0
    %v1772 = vmax.f32 %v1702, 0.0
    %v1773 = vmax.f32 %v1707, 0.0
    %v1774 = vmax.f32 %v1710, 0.0
    %v1775 = vmax.f32 %v1715, 0.0
    %v1776 = vmax.f32 %v1718, 0.0
    %v1777 = vmax.f32 %v1723, 0.0
    %v1778 = vmax.f32 %v1726, 0.0
    %v1779 = vmax.f32 %v1731, 0.0
    %v1780 = vmax.f32 %v1734, 0.0
    %v1781 = vmax.f32 %v1739, 0.0
    %v1782 = vmax.f32 %v1742, 0.0
    %v1783 = vmax.f32 %v1747, 0.0
    %v1784 = vmax.f32 %v1750, 0.0
    %v1785 = vpack.c.bf16 %v1754, %v1753
    %v1786 = vpack.c.bf16 %v1756, %v1755
    %v1787 = vpack.c.bf16 %v1758, %v1757
    %v1788 = vpack.c.bf16 %v1760, %v1759
    %v1789 = vpack.c.bf16 %v1762, %v1761
    %v1790 = vpack.c.bf16 %v1764, %v1763
    %v1791 = vpack.c.bf16 %v1766, %v1765
    %v1792 = vpack.c.bf16 %v1768, %v1767
    %v1793 = vpack.c.bf16 %v1770, %v1769
    %v1794 = vpack.c.bf16 %v1772, %v1771
    %v1795 = vpack.c.bf16 %v1774, %v1773
    %v1796 = vpack.c.bf16 %v1776, %v1775
    %v1797 = vpack.c.bf16 %v1778, %v1777
    %v1798 = vpack.c.bf16 %v1780, %v1779
    %v1799 = vpack.c.bf16 %v1782, %v1781
    %v1800 = vpack.c.bf16 %v1784, %v1783
    %v1801 = vld [vmem:[#allocation8] sm:$0xf]
    %v1802 = vld [vmem:[#allocation8 + $0xc] sm:$0xf]
    %v1803 = vld [vmem:[#allocation8 + $0x18] sm:$0xf]
    %v1804 = vld [vmem:[#allocation8 + $0x24] sm:$0xf]
    %v1805 = vld [vmem:[#allocation8 + $0x30] sm:$0xf]
    %v1806 = vld [vmem:[#allocation8 + $0x3c] sm:$0xf]
    %v1807 = vld [vmem:[#allocation8 + $0x48] sm:$0xf]
    %v1808 = vld [vmem:[#allocation8 + $0x54] sm:$0xf]
    %v1809 = vld [vmem:[#allocation8 + $0x60] sm:$0xf]
    %v1810 = vld [vmem:[#allocation8 + $0x6c] sm:$0xf]
    %v1811 = vld [vmem:[#allocation8 + $0x78] sm:$0xf]
    %v1812 = vld [vmem:[#allocation8 + $0x84] sm:$0xf]
    %v1813 = vld [vmem:[#allocation8 + $0x90] sm:$0xf]
    %v1814 = vld [vmem:[#allocation8 + $0x9c] sm:$0xf]
    %v1815 = vld [vmem:[#allocation8 + $0xa8] sm:$0xf]
    %v1816 = vld [vmem:[#allocation8 + $0xb4] sm:$0xf]
    %v1817 = vld [vmem:[#allocation10 + $0x5] sm:$0x1]
    %v1819 = vlaneseq
    %v1820 = vshrl.u32 %v1819, 7
    %v1821 = vsub.s32 0, %v1820
    %v1822 = vrot.slane %v1817, %v1821
    %v1840 = vunpack.c.l.b16 %v1801
    %v1841 = vunpack.c.l.b16 %v1802
    %v1842 = vunpack.c.l.b16 %v1803
    %v1843 = vunpack.c.l.b16 %v1804
    %v1844 = vunpack.c.l.b16 %v1805
    %v1845 = vunpack.c.l.b16 %v1806
    %v1846 = vunpack.c.l.b16 %v1807
    %v1847 = vunpack.c.l.b16 %v1808
    %v1848 = vunpack.c.l.b16 %v1809
    %v1849 = vunpack.c.l.b16 %v1810
    %v1850 = vunpack.c.l.b16 %v1811
    %v1851 = vunpack.c.l.b16 %v1812
    %v1852 = vunpack.c.l.b16 %v1813
    %v1853 = vunpack.c.l.b16 %v1814
    %v1854 = vunpack.c.l.b16 %v1815
    %v1855 = vunpack.c.l.b16 %v1816
    %v1856 = vpack.c.b16 %v1841, %v1840
    %v1857 = vpack.c.b16 %v1843, %v1842
    %v1858 = vpack.c.b16 %v1845, %v1844
    %v1859 = vpack.c.b16 %v1847, %v1846
    %v1860 = vpack.c.b16 %v1849, %v1848
    %v1861 = vpack.c.b16 %v1851, %v1850
    %v1862 = vpack.c.b16 %v1853, %v1852
    %v1863 = vpack.c.b16 %v1855, %v1854
    %1872 = vmatprep.subr.bf16.mxu0 0
    %1873 = vmatpush1.bf16.msra.mxu0 %v1863
    %1874 = vmatprep.subr.bf16.mxu0 0
    %1875 = vmatpush1.bf16.msra.mxu0 %v1862
    %1876 = vmatprep.subr.bf16.mxu0 0
    %1877 = vmatpush1.bf16.msra.mxu0 %v1861
    %1878 = vmatprep.subr.bf16.mxu0 0
    %1879 = vmatpush1.bf16.msra.mxu0 %v1860
    %1880 = vmatprep.subr.bf16.mxu0 0
    %1881 = vmatpush1.bf16.msra.mxu0 %v1859
    %1882 = vmatprep.subr.bf16.mxu0 0
    %1883 = vmatpush1.bf16.msra.mxu0 %v1858
    %1884 = vmatprep.subr.bf16.mxu0 0
    %1885 = vmatpush1.bf16.msra.mxu0 %v1857
    %1886 = vmatprep.subr.bf16.mxu0 0
    %1887 = vmatpush1.bf16.msra.mxu0 %v1856
    %1888 = vmatprep.subr.bf16.mxu0 0
    %1889 = vmatpush2.bf16.msra.mxu0 0
    %1890 = vmatprep.subr.bf16.mxu0 0
    %1891 = vmatpush2.bf16.msra.mxu0 0
    %1892 = vmatprep.subr.bf16.mxu0 0
    %1893 = vmatpush2.bf16.msra.mxu0 0
    %1894 = vmatprep.subr.bf16.mxu0 0
    %1895 = vmatpush2.bf16.msra.mxu0 0
    %1896 = vmatprep.subr.bf16.mxu0 0
    %1897 = vmatpush2.bf16.msra.mxu0 0
    %1898 = vmatprep.subr.bf16.mxu0 0
    %1899 = vmatpush2.bf16.msra.mxu0 0
    %1900 = vmatprep.subr.bf16.mxu0 0
    %1901 = vmatpush2.bf16.msra.mxu0 0
    %1902 = vmatprep.subr.bf16.mxu0 0
    %1903 = vmatpush2.bf16.msra.mxu0 0
    %1904 = vmatprep.mubr.bf16.mxu0 0
    %1905 = vmatmul.mubr.bf16.gmra.mxu0 %v1785
    %v1906 = vpop.f32.mrf.mxu0
    %v1907 = vadd.f32 %v1822, %v1906
    %v1908 = vpop.f32.mrf.mxu0
    %v1909 = vpop.f32.mrf.mxu0
    %v1910 = vadd.f32 %v1822, %v1909
    %v1911 = vpop.f32.mrf.mxu0
    %1912 = vmatprep.mubr.bf16.mxu0 0
    %1913 = vmatmul.mubr.bf16.gmra.mxu0 %v1786
    %v1914 = vpop.f32.mrf.mxu0
    %v1915 = vadd.f32 %v1822, %v1914
    %v1916 = vpop.f32.mrf.mxu0
    %v1917 = vpop.f32.mrf.mxu0
    %v1918 = vadd.f32 %v1822, %v1917
    %v1919 = vpop.f32.mrf.mxu0
    %1920 = vmatprep.mubr.bf16.mxu0 0
    %1921 = vmatmul.mubr.bf16.gmra.mxu0 %v1787
    %v1922 = vpop.f32.mrf.mxu0
    %v1923 = vadd.f32 %v1822, %v1922
    %v1924 = vpop.f32.mrf.mxu0
    %v1925 = vpop.f32.mrf.mxu0
    %v1926 = vadd.f32 %v1822, %v1925
    %v1927 = vpop.f32.mrf.mxu0
    %1928 = vmatprep.mubr.bf16.mxu0 0
    %1929 = vmatmul.mubr.bf16.gmra.mxu0 %v1788
    %v1930 = vpop.f32.mrf.mxu0
    %v1931 = vadd.f32 %v1822, %v1930
    %v1932 = vpop.f32.mrf.mxu0
    %v1933 = vpop.f32.mrf.mxu0
    %v1934 = vadd.f32 %v1822, %v1933
    %v1935 = vpop.f32.mrf.mxu0
    %1936 = vmatprep.mubr.bf16.mxu0 0
    %1937 = vmatmul.mubr.bf16.gmra.mxu0 %v1789
    %v1938 = vpop.f32.mrf.mxu0
    %v1939 = vadd.f32 %v1822, %v1938
    %v1940 = vpop.f32.mrf.mxu0
    %v1941 = vpop.f32.mrf.mxu0
    %v1942 = vadd.f32 %v1822, %v1941
    %v1943 = vpop.f32.mrf.mxu0
    %1944 = vmatprep.mubr.bf16.mxu0 0
    %1945 = vmatmul.mubr.bf16.gmra.mxu0 %v1790
    %v1946 = vpop.f32.mrf.mxu0
    %v1947 = vadd.f32 %v1822, %v1946
    %v1948 = vpop.f32.mrf.mxu0
    %v1949 = vpop.f32.mrf.mxu0
    %v1950 = vadd.f32 %v1822, %v1949
    %v1951 = vpop.f32.mrf.mxu0
    %1952 = vmatprep.mubr.bf16.mxu0 0
    %1953 = vmatmul.mubr.bf16.gmra.mxu0 %v1791
    %v1954 = vpop.f32.mrf.mxu0
    %v1955 = vadd.f32 %v1822, %v1954
    %v1956 = vpop.f32.mrf.mxu0
    %v1957 = vpop.f32.mrf.mxu0
    %v1958 = vadd.f32 %v1822, %v1957
    %v1959 = vpop.f32.mrf.mxu0
    %1960 = vmatprep.mubr.bf16.mxu0 0
    %1961 = vmatmul.mubr.bf16.gmra.mxu0 %v1792
    %v1962 = vpop.f32.mrf.mxu0
    %v1963 = vadd.f32 %v1822, %v1962
    %v1964 = vpop.f32.mrf.mxu0
    %v1965 = vpop.f32.mrf.mxu0
    %v1966 = vadd.f32 %v1822, %v1965
    %v1967 = vpop.f32.mrf.mxu0
    %1968 = vmatprep.mubr.bf16.mxu0 0
    %1969 = vmatmul.mubr.bf16.gmra.mxu0 %v1793
    %v1970 = vpop.f32.mrf.mxu0
    %v1971 = vadd.f32 %v1822, %v1970
    %v1972 = vpop.f32.mrf.mxu0
    %v1973 = vpop.f32.mrf.mxu0
    %v1974 = vadd.f32 %v1822, %v1973
    %v1975 = vpop.f32.mrf.mxu0
    %1976 = vmatprep.mubr.bf16.mxu0 0
    %1977 = vmatmul.mubr.bf16.gmra.mxu0 %v1794
    %v1978 = vpop.f32.mrf.mxu0
    %v1979 = vadd.f32 %v1822, %v1978
    %v1980 = vpop.f32.mrf.mxu0
    %v1981 = vpop.f32.mrf.mxu0
    %v1982 = vadd.f32 %v1822, %v1981
    %v1983 = vpop.f32.mrf.mxu0
    %1984 = vmatprep.mubr.bf16.mxu0 0
    %1985 = vmatmul.mubr.bf16.gmra.mxu0 %v1795
    %v1986 = vpop.f32.mrf.mxu0
    %v1987 = vadd.f32 %v1822, %v1986
    %v1988 = vpop.f32.mrf.mxu0
    %v1989 = vpop.f32.mrf.mxu0
    %v1990 = vadd.f32 %v1822, %v1989
    %v1991 = vpop.f32.mrf.mxu0
    %1992 = vmatprep.mubr.bf16.mxu0 0
    %1993 = vmatmul.mubr.bf16.gmra.mxu0 %v1796
    %v1994 = vpop.f32.mrf.mxu0
    %v1995 = vadd.f32 %v1822, %v1994
    %v1996 = vpop.f32.mrf.mxu0
    %v1997 = vpop.f32.mrf.mxu0
    %v1998 = vadd.f32 %v1822, %v1997
    %v1999 = vpop.f32.mrf.mxu0
    %2000 = vmatprep.mubr.bf16.mxu0 0
    %2001 = vmatmul.mubr.bf16.gmra.mxu0 %v1797
    %v2002 = vpop.f32.mrf.mxu0
    %v2003 = vadd.f32 %v1822, %v2002
    %v2004 = vpop.f32.mrf.mxu0
    %v2005 = vpop.f32.mrf.mxu0
    %v2006 = vadd.f32 %v1822, %v2005
    %v2007 = vpop.f32.mrf.mxu0
    %2008 = vmatprep.mubr.bf16.mxu0 0
    %2009 = vmatmul.mubr.bf16.gmra.mxu0 %v1798
    %v2010 = vpop.f32.mrf.mxu0
    %v2011 = vadd.f32 %v1822, %v2010
    %v2012 = vpop.f32.mrf.mxu0
    %v2013 = vpop.f32.mrf.mxu0
    %v2014 = vadd.f32 %v1822, %v2013
    %v2015 = vpop.f32.mrf.mxu0
    %2016 = vmatprep.mubr.bf16.mxu0 0
    %2017 = vmatmul.mubr.bf16.gmra.mxu0 %v1799
    %v2018 = vpop.f32.mrf.mxu0
    %v2019 = vadd.f32 %v1822, %v2018
    %v2020 = vpop.f32.mrf.mxu0
    %v2021 = vpop.f32.mrf.mxu0
    %v2022 = vadd.f32 %v1822, %v2021
    %v2023 = vpop.f32.mrf.mxu0
    %2024 = vmatprep.mubr.bf16.mxu0 0
    %2025 = vmatmul.mubr.bf16.gmra.mxu0 %v1800
    %v2026 = vpop.f32.mrf.mxu0
    %v2027 = vadd.f32 %v1822, %v2026
    %v2028 = vpop.f32.mrf.mxu0
    %v2029 = vpop.f32.mrf.mxu0
    %v2030 = vadd.f32 %v1822, %v2029
    %v2031 = vpop.f32.mrf.mxu0
    %2032 = vdwg.mxu0
    %v2033 = vmax.f32 %v1907, 0.0
    %v2034 = vmax.f32 %v1910, 0.0
    %v2035 = vmax.f32 %v1915, 0.0
    %v2036 = vmax.f32 %v1918, 0.0
    %v2037 = vmax.f32 %v1923, 0.0
    %v2038 = vmax.f32 %v1926, 0.0
    %v2039 = vmax.f32 %v1931, 0.0
    %v2040 = vmax.f32 %v1934, 0.0
    %v2041 = vmax.f32 %v1939, 0.0
    %v2042 = vmax.f32 %v1942, 0.0
    %v2043 = vmax.f32 %v1947, 0.0
    %v2044 = vmax.f32 %v1950, 0.0
    %v2045 = vmax.f32 %v1955, 0.0
    %v2046 = vmax.f32 %v1958, 0.0
    %v2047 = vmax.f32 %v1963, 0.0
    %v2048 = vmax.f32 %v1966, 0.0
    %v2049 = vmax.f32 %v1971, 0.0
    %v2050 = vmax.f32 %v1974, 0.0
    %v2051 = vmax.f32 %v1979, 0.0
    %v2052 = vmax.f32 %v1982, 0.0
    %v2053 = vmax.f32 %v1987, 0.0
    %v2054 = vmax.f32 %v1990, 0.0
    %v2055 = vmax.f32 %v1995, 0.0
    %v2056 = vmax.f32 %v1998, 0.0
    %v2057 = vmax.f32 %v2003, 0.0
    %v2058 = vmax.f32 %v2006, 0.0
    %v2059 = vmax.f32 %v2011, 0.0
    %v2060 = vmax.f32 %v2014, 0.0
    %v2061 = vmax.f32 %v2019, 0.0
    %v2062 = vmax.f32 %v2022, 0.0
    %v2063 = vmax.f32 %v2027, 0.0
    %v2064 = vmax.f32 %v2030, 0.0
    %v2065 = vpack.c.bf16 %v2034, %v2033
    %v2066 = vpack.c.bf16 %v2036, %v2035
    %v2067 = vpack.c.bf16 %v2038, %v2037
    %v2068 = vpack.c.bf16 %v2040, %v2039
    %v2069 = vpack.c.bf16 %v2042, %v2041
    %v2070 = vpack.c.bf16 %v2044, %v2043
    %v2071 = vpack.c.bf16 %v2046, %v2045
    %v2072 = vpack.c.bf16 %v2048, %v2047
    %v2073 = vpack.c.bf16 %v2050, %v2049
    %v2074 = vpack.c.bf16 %v2052, %v2051
    %v2075 = vpack.c.bf16 %v2054, %v2053
    %v2076 = vpack.c.bf16 %v2056, %v2055
    %v2077 = vpack.c.bf16 %v2058, %v2057
    %v2078 = vpack.c.bf16 %v2060, %v2059
    %v2079 = vpack.c.bf16 %v2062, %v2061
    %v2080 = vpack.c.bf16 %v2064, %v2063
    %v2081 = vld [vmem:[#allocation8 + $0x4] sm:$0xf]
    %v2082 = vld [vmem:[#allocation8 + $0x10] sm:$0xf]
    %v2083 = vld [vmem:[#allocation8 + $0x1c] sm:$0xf]
    %v2084 = vld [vmem:[#allocation8 + $0x28] sm:$0xf]
    %v2085 = vld [vmem:[#allocation8 + $0x34] sm:$0xf]
    %v2086 = vld [vmem:[#allocation8 + $0x40] sm:$0xf]
    %v2087 = vld [vmem:[#allocation8 + $0x4c] sm:$0xf]
    %v2088 = vld [vmem:[#allocation8 + $0x58] sm:$0xf]
    %v2089 = vld [vmem:[#allocation8 + $0x64] sm:$0xf]
    %v2090 = vld [vmem:[#allocation8 + $0x70] sm:$0xf]
    %v2091 = vld [vmem:[#allocation8 + $0x7c] sm:$0xf]
    %v2092 = vld [vmem:[#allocation8 + $0x88] sm:$0xf]
    %v2093 = vld [vmem:[#allocation8 + $0x94] sm:$0xf]
    %v2094 = vld [vmem:[#allocation8 + $0xa0] sm:$0xf]
    %v2095 = vld [vmem:[#allocation8 + $0xac] sm:$0xf]
    %v2096 = vld [vmem:[#allocation8 + $0xb8] sm:$0xf]
    %v2097 = vld [vmem:[#allocation10 + $0x6] sm:$0x1]
    %v2099 = vlaneseq
    %v2100 = vshrl.u32 %v2099, 7
    %v2101 = vsub.s32 0, %v2100
    %v2102 = vrot.slane %v2097, %v2101
    %v2120 = vunpack.c.l.b16 %v2081
    %v2121 = vunpack.c.l.b16 %v2082
    %v2122 = vunpack.c.l.b16 %v2083
    %v2123 = vunpack.c.l.b16 %v2084
    %v2124 = vunpack.c.l.b16 %v2085
    %v2125 = vunpack.c.l.b16 %v2086
    %v2126 = vunpack.c.l.b16 %v2087
    %v2127 = vunpack.c.l.b16 %v2088
    %v2128 = vunpack.c.l.b16 %v2089
    %v2129 = vunpack.c.l.b16 %v2090
    %v2130 = vunpack.c.l.b16 %v2091
    %v2131 = vunpack.c.l.b16 %v2092
    %v2132 = vunpack.c.l.b16 %v2093
    %v2133 = vunpack.c.l.b16 %v2094
    %v2134 = vunpack.c.l.b16 %v2095
    %v2135 = vunpack.c.l.b16 %v2096
    %v2136 = vpack.c.b16 %v2121, %v2120
    %v2137 = vpack.c.b16 %v2123, %v2122
    %v2138 = vpack.c.b16 %v2125, %v2124
    %v2139 = vpack.c.b16 %v2127, %v2126
    %v2140 = vpack.c.b16 %v2129, %v2128
    %v2141 = vpack.c.b16 %v2131, %v2130
    %v2142 = vpack.c.b16 %v2133, %v2132
    %v2143 = vpack.c.b16 %v2135, %v2134
    %2152 = vmatprep.subr.bf16.mxu0 0
    %2153 = vmatpush1.bf16.msra.mxu0 %v2143
    %2154 = vmatprep.subr.bf16.mxu0 0
    %2155 = vmatpush1.bf16.msra.mxu0 %v2142
    %2156 = vmatprep.subr.bf16.mxu0 0
    %2157 = vmatpush1.bf16.msra.mxu0 %v2141
    %2158 = vmatprep.subr.bf16.mxu0 0
    %2159 = vmatpush1.bf16.msra.mxu0 %v2140
    %2160 = vmatprep.subr.bf16.mxu0 0
    %2161 = vmatpush1.bf16.msra.mxu0 %v2139
    %2162 = vmatprep.subr.bf16.mxu0 0
    %2163 = vmatpush1.bf16.msra.mxu0 %v2138
    %2164 = vmatprep.subr.bf16.mxu0 0
    %2165 = vmatpush1.bf16.msra.mxu0 %v2137
    %2166 = vmatprep.subr.bf16.mxu0 0
    %2167 = vmatpush1.bf16.msra.mxu0 %v2136
    %2168 = vmatprep.subr.bf16.mxu0 0
    %2169 = vmatpush2.bf16.msra.mxu0 0
    %2170 = vmatprep.subr.bf16.mxu0 0
    %2171 = vmatpush2.bf16.msra.mxu0 0
    %2172 = vmatprep.subr.bf16.mxu0 0
    %2173 = vmatpush2.bf16.msra.mxu0 0
    %2174 = vmatprep.subr.bf16.mxu0 0
    %2175 = vmatpush2.bf16.msra.mxu0 0
    %2176 = vmatprep.subr.bf16.mxu0 0
    %2177 = vmatpush2.bf16.msra.mxu0 0
    %2178 = vmatprep.subr.bf16.mxu0 0
    %2179 = vmatpush2.bf16.msra.mxu0 0
    %2180 = vmatprep.subr.bf16.mxu0 0
    %2181 = vmatpush2.bf16.msra.mxu0 0
    %2182 = vmatprep.subr.bf16.mxu0 0
    %2183 = vmatpush2.bf16.msra.mxu0 0
    %2184 = vmatprep.mubr.bf16.mxu0 0
    %2185 = vmatmul.mubr.bf16.gmra.mxu0 %v2065
    %v2186 = vpop.f32.mrf.mxu0
    %v2187 = vadd.f32 %v2102, %v2186
    %v2188 = vpop.f32.mrf.mxu0
    %v2189 = vpop.f32.mrf.mxu0
    %v2190 = vadd.f32 %v2102, %v2189
    %v2191 = vpop.f32.mrf.mxu0
    %2192 = vmatprep.mubr.bf16.mxu0 0
    %2193 = vmatmul.mubr.bf16.gmra.mxu0 %v2066
    %v2194 = vpop.f32.mrf.mxu0
    %v2195 = vadd.f32 %v2102, %v2194
    %v2196 = vpop.f32.mrf.mxu0
    %v2197 = vpop.f32.mrf.mxu0
    %v2198 = vadd.f32 %v2102, %v2197
    %v2199 = vpop.f32.mrf.mxu0
    %2200 = vmatprep.mubr.bf16.mxu0 0
    %2201 = vmatmul.mubr.bf16.gmra.mxu0 %v2067
    %v2202 = vpop.f32.mrf.mxu0
    %v2203 = vadd.f32 %v2102, %v2202
    %v2204 = vpop.f32.mrf.mxu0
    %v2205 = vpop.f32.mrf.mxu0
    %v2206 = vadd.f32 %v2102, %v2205
    %v2207 = vpop.f32.mrf.mxu0
    %2208 = vmatprep.mubr.bf16.mxu0 0
    %2209 = vmatmul.mubr.bf16.gmra.mxu0 %v2068
    %v2210 = vpop.f32.mrf.mxu0
    %v2211 = vadd.f32 %v2102, %v2210
    %v2212 = vpop.f32.mrf.mxu0
    %v2213 = vpop.f32.mrf.mxu0
    %v2214 = vadd.f32 %v2102, %v2213
    %v2215 = vpop.f32.mrf.mxu0
    %2216 = vmatprep.mubr.bf16.mxu0 0
    %2217 = vmatmul.mubr.bf16.gmra.mxu0 %v2069
    %v2218 = vpop.f32.mrf.mxu0
    %v2219 = vadd.f32 %v2102, %v2218
    %v2220 = vpop.f32.mrf.mxu0
    %v2221 = vpop.f32.mrf.mxu0
    %v2222 = vadd.f32 %v2102, %v2221
    %v2223 = vpop.f32.mrf.mxu0
    %2224 = vmatprep.mubr.bf16.mxu0 0
    %2225 = vmatmul.mubr.bf16.gmra.mxu0 %v2070
    %v2226 = vpop.f32.mrf.mxu0
    %v2227 = vadd.f32 %v2102, %v2226
    %v2228 = vpop.f32.mrf.mxu0
    %v2229 = vpop.f32.mrf.mxu0
    %v2230 = vadd.f32 %v2102, %v2229
    %v2231 = vpop.f32.mrf.mxu0
    %2232 = vmatprep.mubr.bf16.mxu0 0
    %2233 = vmatmul.mubr.bf16.gmra.mxu0 %v2071
    %v2234 = vpop.f32.mrf.mxu0
    %v2235 = vadd.f32 %v2102, %v2234
    %v2236 = vpop.f32.mrf.mxu0
    %v2237 = vpop.f32.mrf.mxu0
    %v2238 = vadd.f32 %v2102, %v2237
    %v2239 = vpop.f32.mrf.mxu0
    %2240 = vmatprep.mubr.bf16.mxu0 0
    %2241 = vmatmul.mubr.bf16.gmra.mxu0 %v2072
    %v2242 = vpop.f32.mrf.mxu0
    %v2243 = vadd.f32 %v2102, %v2242
    %v2244 = vpop.f32.mrf.mxu0
    %v2245 = vpop.f32.mrf.mxu0
    %v2246 = vadd.f32 %v2102, %v2245
    %v2247 = vpop.f32.mrf.mxu0
    %2248 = vmatprep.mubr.bf16.mxu0 0
    %2249 = vmatmul.mubr.bf16.gmra.mxu0 %v2073
    %v2250 = vpop.f32.mrf.mxu0
    %v2251 = vadd.f32 %v2102, %v2250
    %v2252 = vpop.f32.mrf.mxu0
    %v2253 = vpop.f32.mrf.mxu0
    %v2254 = vadd.f32 %v2102, %v2253
    %v2255 = vpop.f32.mrf.mxu0
    %2256 = vmatprep.mubr.bf16.mxu0 0
    %2257 = vmatmul.mubr.bf16.gmra.mxu0 %v2074
    %v2258 = vpop.f32.mrf.mxu0
    %v2259 = vadd.f32 %v2102, %v2258
    %v2260 = vpop.f32.mrf.mxu0
    %v2261 = vpop.f32.mrf.mxu0
    %v2262 = vadd.f32 %v2102, %v2261
    %v2263 = vpop.f32.mrf.mxu0
    %2264 = vmatprep.mubr.bf16.mxu0 0
    %2265 = vmatmul.mubr.bf16.gmra.mxu0 %v2075
    %v2266 = vpop.f32.mrf.mxu0
    %v2267 = vadd.f32 %v2102, %v2266
    %v2268 = vpop.f32.mrf.mxu0
    %v2269 = vpop.f32.mrf.mxu0
    %v2270 = vadd.f32 %v2102, %v2269
    %v2271 = vpop.f32.mrf.mxu0
    %2272 = vmatprep.mubr.bf16.mxu0 0
    %2273 = vmatmul.mubr.bf16.gmra.mxu0 %v2076
    %v2274 = vpop.f32.mrf.mxu0
    %v2275 = vadd.f32 %v2102, %v2274
    %v2276 = vpop.f32.mrf.mxu0
    %v2277 = vpop.f32.mrf.mxu0
    %v2278 = vadd.f32 %v2102, %v2277
    %v2279 = vpop.f32.mrf.mxu0
    %2280 = vmatprep.mubr.bf16.mxu0 0
    %2281 = vmatmul.mubr.bf16.gmra.mxu0 %v2077
    %v2282 = vpop.f32.mrf.mxu0
    %v2283 = vadd.f32 %v2102, %v2282
    %v2284 = vpop.f32.mrf.mxu0
    %v2285 = vpop.f32.mrf.mxu0
    %v2286 = vadd.f32 %v2102, %v2285
    %v2287 = vpop.f32.mrf.mxu0
    %2288 = vmatprep.mubr.bf16.mxu0 0
    %2289 = vmatmul.mubr.bf16.gmra.mxu0 %v2078
    %v2290 = vpop.f32.mrf.mxu0
    %v2291 = vadd.f32 %v2102, %v2290
    %v2292 = vpop.f32.mrf.mxu0
    %v2293 = vpop.f32.mrf.mxu0
    %v2294 = vadd.f32 %v2102, %v2293
    %v2295 = vpop.f32.mrf.mxu0
    %2296 = vmatprep.mubr.bf16.mxu0 0
    %2297 = vmatmul.mubr.bf16.gmra.mxu0 %v2079
    %v2298 = vpop.f32.mrf.mxu0
    %v2299 = vadd.f32 %v2102, %v2298
    %v2300 = vpop.f32.mrf.mxu0
    %v2301 = vpop.f32.mrf.mxu0
    %v2302 = vadd.f32 %v2102, %v2301
    %v2303 = vpop.f32.mrf.mxu0
    %2304 = vmatprep.mubr.bf16.mxu0 0
    %2305 = vmatmul.mubr.bf16.gmra.mxu0 %v2080
    %v2306 = vpop.f32.mrf.mxu0
    %v2307 = vadd.f32 %v2102, %v2306
    %v2308 = vpop.f32.mrf.mxu0
    %v2309 = vpop.f32.mrf.mxu0
    %v2310 = vadd.f32 %v2102, %v2309
    %v2311 = vpop.f32.mrf.mxu0
    %2312 = vdwg.mxu0
    %v2313 = vmax.f32 %v2187, 0.0
    %v2314 = vmax.f32 %v2190, 0.0
    %v2315 = vmax.f32 %v2195, 0.0
    %v2316 = vmax.f32 %v2198, 0.0
    %v2317 = vmax.f32 %v2203, 0.0
    %v2318 = vmax.f32 %v2206, 0.0
    %v2319 = vmax.f32 %v2211, 0.0
    %v2320 = vmax.f32 %v2214, 0.0
    %v2321 = vmax.f32 %v2219, 0.0
    %v2322 = vmax.f32 %v2222, 0.0
    %v2323 = vmax.f32 %v2227, 0.0
    %v2324 = vmax.f32 %v2230, 0.0
    %v2325 = vmax.f32 %v2235, 0.0
    %v2326 = vmax.f32 %v2238, 0.0
    %v2327 = vmax.f32 %v2243, 0.0
    %v2328 = vmax.f32 %v2246, 0.0
    %v2329 = vmax.f32 %v2251, 0.0
    %v2330 = vmax.f32 %v2254, 0.0
    %v2331 = vmax.f32 %v2259, 0.0
    %v2332 = vmax.f32 %v2262, 0.0
    %v2333 = vmax.f32 %v2267, 0.0
    %v2334 = vmax.f32 %v2270, 0.0
    %v2335 = vmax.f32 %v2275, 0.0
    %v2336 = vmax.f32 %v2278, 0.0
    %v2337 = vmax.f32 %v2283, 0.0
    %v2338 = vmax.f32 %v2286, 0.0
    %v2339 = vmax.f32 %v2291, 0.0
    %v2340 = vmax.f32 %v2294, 0.0
    %v2341 = vmax.f32 %v2299, 0.0
    %v2342 = vmax.f32 %v2302, 0.0
    %v2343 = vmax.f32 %v2307, 0.0
    %v2344 = vmax.f32 %v2310, 0.0
    %v2345 = vpack.c.bf16 %v2314, %v2313
    %v2346 = vpack.c.bf16 %v2316, %v2315
    %v2347 = vpack.c.bf16 %v2318, %v2317
    %v2348 = vpack.c.bf16 %v2320, %v2319
    %v2349 = vpack.c.bf16 %v2322, %v2321
    %v2350 = vpack.c.bf16 %v2324, %v2323
    %v2351 = vpack.c.bf16 %v2326, %v2325
    %v2352 = vpack.c.bf16 %v2328, %v2327
    %v2353 = vpack.c.bf16 %v2330, %v2329
    %v2354 = vpack.c.bf16 %v2332, %v2331
    %v2355 = vpack.c.bf16 %v2334, %v2333
    %v2356 = vpack.c.bf16 %v2336, %v2335
    %v2357 = vpack.c.bf16 %v2338, %v2337
    %v2358 = vpack.c.bf16 %v2340, %v2339
    %v2359 = vpack.c.bf16 %v2342, %v2341
    %v2360 = vpack.c.bf16 %v2344, %v2343
    %v2361 = vld [vmem:[#allocation8 + $0x8] sm:$0xf]
    %v2362 = vld [vmem:[#allocation8 + $0x14] sm:$0xf]
    %v2363 = vld [vmem:[#allocation8 + $0x20] sm:$0xf]
    %v2364 = vld [vmem:[#allocation8 + $0x2c] sm:$0xf]
    %v2365 = vld [vmem:[#allocation8 + $0x38] sm:$0xf]
    %v2366 = vld [vmem:[#allocation8 + $0x44] sm:$0xf]
    %v2367 = vld [vmem:[#allocation8 + $0x50] sm:$0xf]
    %v2368 = vld [vmem:[#allocation8 + $0x5c] sm:$0xf]
    %v2369 = vld [vmem:[#allocation8 + $0x68] sm:$0xf]
    %v2370 = vld [vmem:[#allocation8 + $0x74] sm:$0xf]
    %v2371 = vld [vmem:[#allocation8 + $0x80] sm:$0xf]
    %v2372 = vld [vmem:[#allocation8 + $0x8c] sm:$0xf]
    %v2373 = vld [vmem:[#allocation8 + $0x98] sm:$0xf]
    %v2374 = vld [vmem:[#allocation8 + $0xa4] sm:$0xf]
    %v2375 = vld [vmem:[#allocation8 + $0xb0] sm:$0xf]
    %v2376 = vld [vmem:[#allocation8 + $0xbc] sm:$0xf]
    %v2377 = vld [vmem:[#allocation10 + $0x7] sm:$0x1]
    %v2379 = vlaneseq
    %v2380 = vshrl.u32 %v2379, 7
    %v2381 = vsub.s32 0, %v2380
    %v2382 = vrot.slane %v2377, %v2381
    %v2400 = vunpack.c.l.b16 %v2361
    %v2401 = vunpack.c.l.b16 %v2362
    %v2402 = vunpack.c.l.b16 %v2363
    %v2403 = vunpack.c.l.b16 %v2364
    %v2404 = vunpack.c.l.b16 %v2365
    %v2405 = vunpack.c.l.b16 %v2366
    %v2406 = vunpack.c.l.b16 %v2367
    %v2407 = vunpack.c.l.b16 %v2368
    %v2408 = vunpack.c.l.b16 %v2369
    %v2409 = vunpack.c.l.b16 %v2370
    %v2410 = vunpack.c.l.b16 %v2371
    %v2411 = vunpack.c.l.b16 %v2372
    %v2412 = vunpack.c.l.b16 %v2373
    %v2413 = vunpack.c.l.b16 %v2374
    %v2414 = vunpack.c.l.b16 %v2375
    %v2415 = vunpack.c.l.b16 %v2376
    %v2416 = vpack.c.b16 %v2401, %v2400
    %v2417 = vpack.c.b16 %v2403, %v2402
    %v2418 = vpack.c.b16 %v2405, %v2404
    %v2419 = vpack.c.b16 %v2407, %v2406
    %v2420 = vpack.c.b16 %v2409, %v2408
    %v2421 = vpack.c.b16 %v2411, %v2410
    %v2422 = vpack.c.b16 %v2413, %v2412
    %v2423 = vpack.c.b16 %v2415, %v2414
    %2432 = vmatprep.subr.bf16.mxu0 0
    %2433 = vmatpush1.bf16.msra.mxu0 %v2423
    %2434 = vmatprep.subr.bf16.mxu0 0
    %2435 = vmatpush1.bf16.msra.mxu0 %v2422
    %2436 = vmatprep.subr.bf16.mxu0 0
    %2437 = vmatpush1.bf16.msra.mxu0 %v2421
    %2438 = vmatprep.subr.bf16.mxu0 0
    %2439 = vmatpush1.bf16.msra.mxu0 %v2420
    %2440 = vmatprep.subr.bf16.mxu0 0
    %2441 = vmatpush1.bf16.msra.mxu0 %v2419
    %2442 = vmatprep.subr.bf16.mxu0 0
    %2443 = vmatpush1.bf16.msra.mxu0 %v2418
    %2444 = vmatprep.subr.bf16.mxu0 0
    %2445 = vmatpush1.bf16.msra.mxu0 %v2417
    %2446 = vmatprep.subr.bf16.mxu0 0
    %2447 = vmatpush1.bf16.msra.mxu0 %v2416
    %2448 = vmatprep.subr.bf16.mxu0 0
    %2449 = vmatpush2.bf16.msra.mxu0 0
    %2450 = vmatprep.subr.bf16.mxu0 0
    %2451 = vmatpush2.bf16.msra.mxu0 0
    %2452 = vmatprep.subr.bf16.mxu0 0
    %2453 = vmatpush2.bf16.msra.mxu0 0
    %2454 = vmatprep.subr.bf16.mxu0 0
    %2455 = vmatpush2.bf16.msra.mxu0 0
    %2456 = vmatprep.subr.bf16.mxu0 0
    %2457 = vmatpush2.bf16.msra.mxu0 0
    %2458 = vmatprep.subr.bf16.mxu0 0
    %2459 = vmatpush2.bf16.msra.mxu0 0
    %2460 = vmatprep.subr.bf16.mxu0 0
    %2461 = vmatpush2.bf16.msra.mxu0 0
    %2462 = vmatprep.subr.bf16.mxu0 0
    %2463 = vmatpush2.bf16.msra.mxu0 0
    %2464 = vmatprep.mubr.bf16.mxu0 0
    %2465 = vmatmul.mubr.bf16.gmra.mxu0 %v2345
    %v2466 = vpop.f32.mrf.mxu0
    %v2467 = vadd.f32 %v2382, %v2466
    %v2468 = vpop.f32.mrf.mxu0
    %v2469 = vpop.f32.mrf.mxu0
    %v2470 = vadd.f32 %v2382, %v2469
    %v2471 = vpop.f32.mrf.mxu0
    %2472 = vmatprep.mubr.bf16.mxu0 0
    %2473 = vmatmul.mubr.bf16.gmra.mxu0 %v2346
    %v2474 = vpop.f32.mrf.mxu0
    %v2475 = vadd.f32 %v2382, %v2474
    %v2476 = vpop.f32.mrf.mxu0
    %v2477 = vpop.f32.mrf.mxu0
    %v2478 = vadd.f32 %v2382, %v2477
    %v2479 = vpop.f32.mrf.mxu0
    %2480 = vmatprep.mubr.bf16.mxu0 0
    %2481 = vmatmul.mubr.bf16.gmra.mxu0 %v2347
    %v2482 = vpop.f32.mrf.mxu0
    %v2483 = vadd.f32 %v2382, %v2482
    %v2484 = vpop.f32.mrf.mxu0
    %v2485 = vpop.f32.mrf.mxu0
    %v2486 = vadd.f32 %v2382, %v2485
    %v2487 = vpop.f32.mrf.mxu0
    %2488 = vmatprep.mubr.bf16.mxu0 0
    %2489 = vmatmul.mubr.bf16.gmra.mxu0 %v2348
    %v2490 = vpop.f32.mrf.mxu0
    %v2491 = vadd.f32 %v2382, %v2490
    %v2492 = vpop.f32.mrf.mxu0
    %v2493 = vpop.f32.mrf.mxu0
    %v2494 = vadd.f32 %v2382, %v2493
    %v2495 = vpop.f32.mrf.mxu0
    %2496 = vmatprep.mubr.bf16.mxu0 0
    %2497 = vmatmul.mubr.bf16.gmra.mxu0 %v2349
    %v2498 = vpop.f32.mrf.mxu0
    %v2499 = vadd.f32 %v2382, %v2498
    %v2500 = vpop.f32.mrf.mxu0
    %v2501 = vpop.f32.mrf.mxu0
    %v2502 = vadd.f32 %v2382, %v2501
    %v2503 = vpop.f32.mrf.mxu0
    %2504 = vmatprep.mubr.bf16.mxu0 0
    %2505 = vmatmul.mubr.bf16.gmra.mxu0 %v2350
    %v2506 = vpop.f32.mrf.mxu0
    %v2507 = vadd.f32 %v2382, %v2506
    %v2508 = vpop.f32.mrf.mxu0
    %v2509 = vpop.f32.mrf.mxu0
    %v2510 = vadd.f32 %v2382, %v2509
    %v2511 = vpop.f32.mrf.mxu0
    %2512 = vmatprep.mubr.bf16.mxu0 0
    %2513 = vmatmul.mubr.bf16.gmra.mxu0 %v2351
    %v2514 = vpop.f32.mrf.mxu0
    %v2515 = vadd.f32 %v2382, %v2514
    %v2516 = vpop.f32.mrf.mxu0
    %v2517 = vpop.f32.mrf.mxu0
    %v2518 = vadd.f32 %v2382, %v2517
    %v2519 = vpop.f32.mrf.mxu0
    %2520 = vmatprep.mubr.bf16.mxu0 0
    %2521 = vmatmul.mubr.bf16.gmra.mxu0 %v2352
    %v2522 = vpop.f32.mrf.mxu0
    %v2523 = vadd.f32 %v2382, %v2522
    %v2524 = vpop.f32.mrf.mxu0
    %v2525 = vpop.f32.mrf.mxu0
    %v2526 = vadd.f32 %v2382, %v2525
    %v2527 = vpop.f32.mrf.mxu0
    %2528 = vmatprep.mubr.bf16.mxu0 0
    %2529 = vmatmul.mubr.bf16.gmra.mxu0 %v2353
    %v2530 = vpop.f32.mrf.mxu0
    %v2531 = vadd.f32 %v2382, %v2530
    %v2532 = vpop.f32.mrf.mxu0
    %v2533 = vpop.f32.mrf.mxu0
    %v2534 = vadd.f32 %v2382, %v2533
    %v2535 = vpop.f32.mrf.mxu0
    %2536 = vmatprep.mubr.bf16.mxu0 0
    %2537 = vmatmul.mubr.bf16.gmra.mxu0 %v2354
    %v2538 = vpop.f32.mrf.mxu0
    %v2539 = vadd.f32 %v2382, %v2538
    %v2540 = vpop.f32.mrf.mxu0
    %v2541 = vpop.f32.mrf.mxu0
    %v2542 = vadd.f32 %v2382, %v2541
    %v2543 = vpop.f32.mrf.mxu0
    %2544 = vmatprep.mubr.bf16.mxu0 0
    %2545 = vmatmul.mubr.bf16.gmra.mxu0 %v2355
    %v2546 = vpop.f32.mrf.mxu0
    %v2547 = vadd.f32 %v2382, %v2546
    %v2548 = vpop.f32.mrf.mxu0
    %v2549 = vpop.f32.mrf.mxu0
    %v2550 = vadd.f32 %v2382, %v2549
    %v2551 = vpop.f32.mrf.mxu0
    %2552 = vmatprep.mubr.bf16.mxu0 0
    %2553 = vmatmul.mubr.bf16.gmra.mxu0 %v2356
    %v2554 = vpop.f32.mrf.mxu0
    %v2555 = vadd.f32 %v2382, %v2554
    %v2556 = vpop.f32.mrf.mxu0
    %v2557 = vpop.f32.mrf.mxu0
    %v2558 = vadd.f32 %v2382, %v2557
    %v2559 = vpop.f32.mrf.mxu0
    %2560 = vmatprep.mubr.bf16.mxu0 0
    %2561 = vmatmul.mubr.bf16.gmra.mxu0 %v2357
    %v2562 = vpop.f32.mrf.mxu0
    %v2563 = vadd.f32 %v2382, %v2562
    %v2564 = vpop.f32.mrf.mxu0
    %v2565 = vpop.f32.mrf.mxu0
    %v2566 = vadd.f32 %v2382, %v2565
    %v2567 = vpop.f32.mrf.mxu0
    %2568 = vmatprep.mubr.bf16.mxu0 0
    %2569 = vmatmul.mubr.bf16.gmra.mxu0 %v2358
    %v2570 = vpop.f32.mrf.mxu0
    %v2571 = vadd.f32 %v2382, %v2570
    %v2572 = vpop.f32.mrf.mxu0
    %v2573 = vpop.f32.mrf.mxu0
    %v2574 = vadd.f32 %v2382, %v2573
    %v2575 = vpop.f32.mrf.mxu0
    %2576 = vmatprep.mubr.bf16.mxu0 0
    %2577 = vmatmul.mubr.bf16.gmra.mxu0 %v2359
    %v2578 = vpop.f32.mrf.mxu0
    %v2579 = vadd.f32 %v2382, %v2578
    %v2580 = vpop.f32.mrf.mxu0
    %v2581 = vpop.f32.mrf.mxu0
    %v2582 = vadd.f32 %v2382, %v2581
    %v2583 = vpop.f32.mrf.mxu0
    %2584 = vmatprep.mubr.bf16.mxu0 0
    %2585 = vmatmul.mubr.bf16.gmra.mxu0 %v2360
    %v2586 = vpop.f32.mrf.mxu0
    %v2587 = vadd.f32 %v2382, %v2586
    %v2588 = vpop.f32.mrf.mxu0
    %v2589 = vpop.f32.mrf.mxu0
    %v2590 = vadd.f32 %v2382, %v2589
    %v2591 = vpop.f32.mrf.mxu0
    %2592 = vdwg.mxu0
    %v2593 = vmax.f32 %v2467, 0.0
    %v2594 = vmax.f32 %v2470, 0.0
    %v2595 = vmax.f32 %v2475, 0.0
    %v2596 = vmax.f32 %v2478, 0.0
    %v2597 = vmax.f32 %v2483, 0.0
    %v2598 = vmax.f32 %v2486, 0.0
    %v2599 = vmax.f32 %v2491, 0.0
    %v2600 = vmax.f32 %v2494, 0.0
    %v2601 = vmax.f32 %v2499, 0.0
    %v2602 = vmax.f32 %v2502, 0.0
    %v2603 = vmax.f32 %v2507, 0.0
    %v2604 = vmax.f32 %v2510, 0.0
    %v2605 = vmax.f32 %v2515, 0.0
    %v2606 = vmax.f32 %v2518, 0.0
    %v2607 = vmax.f32 %v2523, 0.0
    %v2608 = vmax.f32 %v2526, 0.0
    %v2609 = vmax.f32 %v2531, 0.0
    %v2610 = vmax.f32 %v2534, 0.0
    %v2611 = vmax.f32 %v2539, 0.0
    %v2612 = vmax.f32 %v2542, 0.0
    %v2613 = vmax.f32 %v2547, 0.0
    %v2614 = vmax.f32 %v2550, 0.0
    %v2615 = vmax.f32 %v2555, 0.0
    %v2616 = vmax.f32 %v2558, 0.0
    %v2617 = vmax.f32 %v2563, 0.0
    %v2618 = vmax.f32 %v2566, 0.0
    %v2619 = vmax.f32 %v2571, 0.0
    %v2620 = vmax.f32 %v2574, 0.0
    %v2621 = vmax.f32 %v2579, 0.0
    %v2622 = vmax.f32 %v2582, 0.0
    %v2623 = vmax.f32 %v2587, 0.0
    %v2624 = vmax.f32 %v2590, 0.0
    %2625 = vst [vmem:[#allocation11] sm:$0xff] %v2593
    %2626 = vst [vmem:[#allocation11 + $0x8] sm:$0xff] %v2594
    %2627 = vst [vmem:[#allocation11 + $0x10] sm:$0xff] %v2595
    %2628 = vst [vmem:[#allocation11 + $0x18] sm:$0xff] %v2596
    %2629 = vst [vmem:[#allocation11 + $0x20] sm:$0xff] %v2597
    %2630 = vst [vmem:[#allocation11 + $0x28] sm:$0xff] %v2598
    %2631 = vst [vmem:[#allocation11 + $0x30] sm:$0xff] %v2599
    %2632 = vst [vmem:[#allocation11 + $0x38] sm:$0xff] %v2600
    %2633 = vst [vmem:[#allocation11 + $0x40] sm:$0xff] %v2601
    %2634 = vst [vmem:[#allocation11 + $0x48] sm:$0xff] %v2602
    %2635 = vst [vmem:[#allocation11 + $0x50] sm:$0xff] %v2603
    %2636 = vst [vmem:[#allocation11 + $0x58] sm:$0xff] %v2604
    %2637 = vst [vmem:[#allocation11 + $0x60] sm:$0xff] %v2605
    %2638 = vst [vmem:[#allocation11 + $0x68] sm:$0xff] %v2606
    %2639 = vst [vmem:[#allocation11 + $0x70] sm:$0xff] %v2607
    %2640 = vst [vmem:[#allocation11 + $0x78] sm:$0xff] %v2608
    %2641 = vst [vmem:[#allocation11 + $0x80] sm:$0xff] %v2609
    %2642 = vst [vmem:[#allocation11 + $0x88] sm:$0xff] %v2610
    %2643 = vst [vmem:[#allocation11 + $0x90] sm:$0xff] %v2611
    %2644 = vst [vmem:[#allocation11 + $0x98] sm:$0xff] %v2612
    %2645 = vst [vmem:[#allocation11 + $0xa0] sm:$0xff] %v2613
    %2646 = vst [vmem:[#allocation11 + $0xa8] sm:$0xff] %v2614
    %2647 = vst [vmem:[#allocation11 + $0xb0] sm:$0xff] %v2615
    %2648 = vst [vmem:[#allocation11 + $0xb8] sm:$0xff] %v2616
    %2649 = vst [vmem:[#allocation11 + $0xc0] sm:$0xff] %v2617
    %2650 = vst [vmem:[#allocation11 + $0xc8] sm:$0xff] %v2618
    %2651 = vst [vmem:[#allocation11 + $0xd0] sm:$0xff] %v2619
    %2652 = vst [vmem:[#allocation11 + $0xd8] sm:$0xff] %v2620
    %2653 = vst [vmem:[#allocation11 + $0xe0] sm:$0xff] %v2621
    %2654 = vst [vmem:[#allocation11 + $0xe8] sm:$0xff] %v2622
    %2655 = vst [vmem:[#allocation11 + $0xf0] sm:$0xff] %v2623
    %2656 = vst [vmem:[#allocation11 + $0xf8] sm:$0xff] %v2624
    // Predicated region
    $region42: #{tpu_custom_call.1} parent=1 // pred_check
      _
    $region43: #{tpu_custom_call.1} parent=1 // pred_check_branch
      %2658 = sbr.rel (0) target = $region45
    $region44: #{tpu_custom_call.1} parent=1 // pred_region
      %s2660 = ssub.s32 4096, 4096
      %2661 = vsyncadd [#allocation4], %s2660
      %s2662 = sshll.u32 [#allocation11], 4
      %s2663 = int_to_ptr.vmem [resolvable:$true] %s2662
      %2668 = dma.vmem_to_hbm [thread:$0]  %s2663, 4096, %s5, [#allocation4], 128, 128, 8
    $region45: #{tpu_custom_call.1} parent=1 // pred_fallthru
      _
    // Predicated region
    $region46: #{tpu_custom_call.1} parent=1 // pred_check
      _
    $region47: #{tpu_custom_call.1} parent=1 // pred_check_branch
      %2670 = sbr.rel (0) target = $region49
    $region48: #{tpu_custom_call.1} parent=1 // pred_region
      %2671 = dma.done [#allocation4], 4096
    $region49: #{tpu_custom_call.1} parent=1 // pred_fallthru
      _
    %2672 = vsyncpa [#allocation3], 1
    %2673 = vsyncpa [#allocation6], 1
    %2674 = vsyncpa [#allocation9], 1
    %2675 = vsyncpa [#allocation4], 1

</llo_original>
